<compile_context>
chip_gen: v6e
topology: v6e:2x2x1
jax: 0.10.0
libtpu: 0.0.40
codegen_flags: <defaults>
</compile_context>

<pallas_src>
import jax
import jax.numpy as jnp
from jax.experimental import pallas as pl
from jax.experimental.pallas import tpu as pltpu

D_IN = 32 * 32 * 3        # 3072 (multiple of 128)
H = 200                   # logical hidden size (PyTorch)
H_PAD = 256               # lane-aligned hidden size used inside the kernel
D_OUT = 10                # logical output size
D_OUT_PAD = 128           # lane-aligned output size used inside the kernel
TILE_B_MAX = 256          # main tuning knob: batch tile (MXU-row aligned)


def _round_up(x, m):
    return ((x + m - 1) // m) * m


def _mlp_kernel(x_ref, w1_ref, b1_ref, w2_ref, b2_ref, w3_ref, b3_ref, o_ref):
    # All three matmuls + tanh fused per batch tile. Operands are bf16, MXU
    # accumulation is f32, biases/tanh are f32. Weights are resident in VMEM
    # across grid steps (their index_map always returns block (0, 0)).
    x = x_ref[...]                                                    # (TB, D_IN) bf16
    h1 = jnp.dot(x, w1_ref[...], preferred_element_type=jnp.float32) + b1_ref[...]
    h1 = jnp.tanh(h1).astype(jnp.bfloat16)                            # (TB, H_PAD)
    h2 = jnp.dot(h1, w2_ref[...], preferred_element_type=jnp.float32) + b2_ref[...]
    h2 = jnp.tanh(h2).astype(jnp.bfloat16)                            # (TB, H_PAD)
    o_ref[...] = (
        jnp.dot(h2, w3_ref[...], preferred_element_type=jnp.float32) + b3_ref[...]
    )                                                                 # (TB, D_OUT_PAD) f32


@jax.jit
def tanhnet2_forward(x_nchw, w1p, b1p, w2p, b2p, w3p, b3p):
    """x_nchw: (B, 3, 32, 32) float32. Padded/bf16 params from prepare_params().

    Returns logits (B, 10) float32."""
    B = x_nchw.shape[0]
    # Row-major flatten == torch's x.view(B, -1); cast operands to bf16.
    x2d = x_nchw.reshape(B, -1).astype(jnp.bfloat16)

    # Batch tiling: single grid step for small batches, 256-row tiles otherwise.
    if B >= TILE_B_MAX:
        tile_b = TILE_B_MAX
    else:
        tile_b = _round_up(B, 8)          # sublane-aligned, single step
    b_pad = _round_up(B, tile_b)
    if b_pad != B:
        x2d = jnp.pad(x2d, ((0, b_pad - B), (0, 0)))

    grid = (b_pad // tile_b,)
    out_padded = pl.pallas_call(
        _mlp_kernel,
        out_shape=jax.ShapeDtypeStruct((b_pad, D_OUT_PAD), jnp.float32),
        grid_spec=pltpu.PrefetchScalarGridSpec(
            num_scalar_prefetch=0,
            grid=grid,
            in_specs=[
                pl.BlockSpec((tile_b, D_IN), lambda i: (i, 0)),       # x tile
                pl.BlockSpec((D_IN, H_PAD), lambda i: (0, 0)),        # w1 (bf16)
                pl.BlockSpec((1, H_PAD), lambda i: (0, 0)),           # b1 (f32)
                pl.BlockSpec((H_PAD, H_PAD), lambda i: (0, 0)),       # w2 (bf16)
                pl.BlockSpec((1, H_PAD), lambda i: (0, 0)),           # b2 (f32)
                pl.BlockSpec((H_PAD, D_OUT_PAD), lambda i: (0, 0)),   # w3 (bf16)
                pl.BlockSpec((1, D_OUT_PAD), lambda i: (0, 0)),       # b3 (f32)
            ],
            out_specs=pl.BlockSpec((tile_b, D_OUT_PAD), lambda i: (i, 0)),
        ),
        compiler_params=pltpu.CompilerParams(
            dimension_semantics=("parallel",),
        ),
    )(x2d, w1p, b1p, w2p, b2p, w3p, b3p)

    # Slice away batch / lane padding.
    return out_padded[:B, :D_OUT]


def init_params(key):
    """Deterministic init mimicking nn.Linear's U(-1/sqrt(fan_in), 1/sqrt(fan_in)).

    Weights are returned already transposed to (in, out), float32, unpadded."""
    ks = jax.random.split(key, 6)

    def linear(kw, kb, fan_in, fan_out):
        bound = 1.0 / jnp.sqrt(jnp.float32(fan_in))
        w = jax.random.uniform(kw, (fan_in, fan_out), jnp.float32, -bound, bound)
        b = jax.random.uniform(kb, (1, fan_out), jnp.float32, -bound, bound)
        return w, b

    w1, b1 = linear(ks[0], ks[1], D_IN, H)
    w2, b2 = linear(ks[2], ks[3], H, H)
    w3, b3 = linear(ks[4], ks[5], H, D_OUT)
    return w1, b1, w2, b2, w3, b3


def prepare_params(w1, b1, w2, b2, w3, b3):
    """One-time: zero-pad to lane-aligned shapes; cast weights to bf16.

    Zero padding is exact: tanh(0)=0, zero weight rows/cols contribute nothing,
    and the wrapper slices the padded output columns away."""
    w1p = jnp.pad(w1, ((0, 0), (0, H_PAD - H))).astype(jnp.bfloat16)
    b1p = jnp.pad(b1, ((0, 0), (0, H_PAD - H)))
    w2p = jnp.pad(w2, ((0, H_PAD - H), (0, H_PAD - H))).astype(jnp.bfloat16)
    b2p = jnp.pad(b2, ((0, 0), (0, H_PAD - H)))
    w3p = jnp.pad(w3, ((0, H_PAD - H), (0, D_OUT_PAD - D_OUT))).astype(jnp.bfloat16)
    b3p = jnp.pad(b3, ((0, 0), (0, D_OUT_PAD - D_OUT)))
    return w1p, b1p, w2p, b2p, w3p, b3p


def _reference_forward(x_nchw, w1, b1, w2, b2, w3, b3):
    x = x_nchw.reshape(x_nchw.shape[0], -1)
    h1 = jnp.tanh(x @ w1 + b1)
    h2 = jnp.tanh(h1 @ w2 + b2)
    return h2 @ w3 + b3


if __name__ == "__main__":
    key = jax.random.PRNGKey(0)
    k_x, k_p = jax.random.split(key)

    B = 4  # small batch; no divisibility requirement (wrapper pads)
    x = jax.random.normal(k_x, (B, 3, 32, 32), dtype=jnp.float32)

    params_f32 = init_params(k_p)
    params_kernel = prepare_params(*params_f32)

    out = tanhnet2_forward(x, *params_kernel)
    out = jax.block_until_ready(out)

    ref = _reference_forward(x, *params_f32)  # f32 reference
    assert out.shape == (B, D_OUT)
    # bf16 operands with f32 accumulation: allow modest tolerance vs f32 ref.
    assert jnp.allclose(out, ref, atol=3e-2, rtol=3e-2), (
        float(jnp.max(jnp.abs(out - ref)))
    )

    print("KERNEL_OK")
</pallas_src>

<mosaic_0001>
module attributes {stable_mosaic.version = 11 : i64} {
  func.func @_mlp_kernel(%arg0: i32, %arg1: memref<8x3072xbf16, #tpu.memory_space<vmem>>, %arg2: memref<3072x256xbf16, #tpu.memory_space<vmem>>, %arg3: memref<1x256xf32, #tpu.memory_space<vmem>>, %arg4: memref<256x256xbf16, #tpu.memory_space<vmem>>, %arg5: memref<1x256xf32, #tpu.memory_space<vmem>>, %arg6: memref<256x128xbf16, #tpu.memory_space<vmem>>, %arg7: memref<1x128xf32, #tpu.memory_space<vmem>>, %arg8: memref<8x128xf32, #tpu.memory_space<vmem>>) attributes {dimension_semantics = [#tpu.dimension_semantics<parallel>], iteration_bounds = array<i64: 1>, scalar_prefetch = 0 : i64, scratch_operands = 0 : i64, tpu.core_type = #tpu.core_type<tc>, window_params = [{transform_indices = @transform_0, window_bounds = array<i64: 8, 3072>}, {pipeline_mode = #tpu.pipeline_mode<synchronous>, transform_indices = @transform_1, window_bounds = array<i64: 3072, 256>}, {pipeline_mode = #tpu.pipeline_mode<synchronous>, transform_indices = @transform_2, window_bounds = array<i64: 1, 256>}, {pipeline_mode = #tpu.pipeline_mode<synchronous>, transform_indices = @transform_3, window_bounds = array<i64: 256, 256>}, {pipeline_mode = #tpu.pipeline_mode<synchronous>, transform_indices = @transform_4, window_bounds = array<i64: 1, 256>}, {pipeline_mode = #tpu.pipeline_mode<synchronous>, transform_indices = @transform_5, window_bounds = array<i64: 256, 128>}, {pipeline_mode = #tpu.pipeline_mode<synchronous>, transform_indices = @transform_6, window_bounds = array<i64: 1, 128>}, {transform_indices = @transform_7, window_bounds = array<i64: 8, 128>}]} {
    %c0 = arith.constant 0 : index
    %c0_0 = arith.constant 0 : index
    %0 = vector.load %arg1[%c0, %c0_0] : memref<8x3072xbf16, #tpu.memory_space<vmem>>, vector<8x3072xbf16>
    %c0_1 = arith.constant 0 : index
    %c0_2 = arith.constant 0 : index
    %1 = vector.load %arg2[%c0_1, %c0_2] : memref<3072x256xbf16, #tpu.memory_space<vmem>>, vector<3072x256xbf16>
    %cst = arith.constant dense<0.000000e+00> : vector<8x256xf32>
    %2 = tpu.matmul %0, %1, %cst {dimension_numbers = #tpu.dot_dimension_numbers<[1], [0], [0], [1], [0, 0, 1, 1], [], []>} : vector<8x3072xbf16>, vector<3072x256xbf16>, vector<8x256xf32> -> vector<8x256xf32>
    %c0_3 = arith.constant 0 : index
    %c0_4 = arith.constant 0 : index
    %3 = vector.load %arg3[%c0_3, %c0_4] : memref<1x256xf32, #tpu.memory_space<vmem>>, vector<1x256xf32>
    %4 = vector.broadcast %3 : vector<1x256xf32> to vector<8x256xf32>
    %5 = arith.addf %2, %4 : vector<8x256xf32>
    %6 = math.tanh %5 : vector<8x256xf32>
    %7 = arith.truncf %6 : vector<8x256xf32> to vector<8x256xbf16>
    %c0_5 = arith.constant 0 : index
    %c0_6 = arith.constant 0 : index
    %8 = vector.load %arg4[%c0_5, %c0_6] : memref<256x256xbf16, #tpu.memory_space<vmem>>, vector<256x256xbf16>
    %cst_7 = arith.constant dense<0.000000e+00> : vector<8x256xf32>
    %9 = tpu.matmul %7, %8, %cst_7 {dimension_numbers = #tpu.dot_dimension_numbers<[1], [0], [0], [1], [0, 0, 1, 1], [], []>} : vector<8x256xbf16>, vector<256x256xbf16>, vector<8x256xf32> -> vector<8x256xf32>
    %c0_8 = arith.constant 0 : index
    %c0_9 = arith.constant 0 : index
    %10 = vector.load %arg5[%c0_8, %c0_9] : memref<1x256xf32, #tpu.memory_space<vmem>>, vector<1x256xf32>
    %11 = vector.broadcast %10 : vector<1x256xf32> to vector<8x256xf32>
    %12 = arith.addf %9, %11 : vector<8x256xf32>
    %13 = math.tanh %12 : vector<8x256xf32>
    %14 = arith.truncf %13 : vector<8x256xf32> to vector<8x256xbf16>
    %c0_10 = arith.constant 0 : index
    %c0_11 = arith.constant 0 : index
    %15 = vector.load %arg6[%c0_10, %c0_11] : memref<256x128xbf16, #tpu.memory_space<vmem>>, vector<256x128xbf16>
    %cst_12 = arith.constant dense<0.000000e+00> : vector<8x128xf32>
    %16 = tpu.matmul %14, %15, %cst_12 {dimension_numbers = #tpu.dot_dimension_numbers<[1], [0], [0], [1], [0, 0, 1, 1], [], []>} : vector<8x256xbf16>, vector<256x128xbf16>, vector<8x128xf32> -> vector<8x128xf32>
    %c0_13 = arith.constant 0 : index
    %c0_14 = arith.constant 0 : index
    %17 = vector.load %arg7[%c0_13, %c0_14] : memref<1x128xf32, #tpu.memory_space<vmem>>, vector<1x128xf32>
    %18 = vector.broadcast %17 : vector<1x128xf32> to vector<8x128xf32>
    %19 = arith.addf %16, %18 : vector<8x128xf32>
    %c0_15 = arith.constant 0 : index
    %c0_16 = arith.constant 0 : index
    %20 = vector.load %arg8[%c0_15, %c0_16] : memref<8x128xf32, #tpu.memory_space<vmem>>, vector<8x128xf32>
    tpu.vector_store %arg8[%c0_15, %c0_16], %19 {strides = array<i32>} : memref<8x128xf32, #tpu.memory_space<vmem>>, vector<8x128xf32>,
    return
  }
  func.func @transform_0(%arg0: i32) -> (i32, i32) {
    %c0_i32 = arith.constant 0 : i32
    %c0_i32_0 = arith.constant 0 : i32
    return %arg0, %c0_i32 : i32, i32
  }
  func.func @transform_1(%arg0: i32) -> (i32, i32) {
    %c0_i32 = arith.constant 0 : i32
    %c0_i32_0 = arith.constant 0 : i32
    %c0_i32_1 = arith.constant 0 : i32
    return %c0_i32, %c0_i32_0 : i32, i32
  }
  func.func @transform_2(%arg0: i32) -> (i32, i32) {
    %c0_i32 = arith.constant 0 : i32
    %c0_i32_0 = arith.constant 0 : i32
    %c0_i32_1 = arith.constant 0 : i32
    return %c0_i32, %c0_i32_0 : i32, i32
  }
  func.func @transform_3(%arg0: i32) -> (i32, i32) {
    %c0_i32 = arith.constant 0 : i32
    %c0_i32_0 = arith.constant 0 : i32
    %c0_i32_1 = arith.constant 0 : i32
    return %c0_i32, %c0_i32_0 : i32, i32
  }
  func.func @transform_4(%arg0: i32) -> (i32, i32) {
    %c0_i32 = arith.constant 0 : i32
    %c0_i32_0 = arith.constant 0 : i32
    %c0_i32_1 = arith.constant 0 : i32
    return %c0_i32, %c0_i32_0 : i32, i32
  }
  func.func @transform_5(%arg0: i32) -> (i32, i32) {
    %c0_i32 = arith.constant 0 : i32
    %c0_i32_0 = arith.constant 0 : i32
    %c0_i32_1 = arith.constant 0 : i32
    return %c0_i32, %c0_i32_0 : i32, i32
  }
  func.func @transform_6(%arg0: i32) -> (i32, i32) {
    %c0_i32 = arith.constant 0 : i32
    %c0_i32_0 = arith.constant 0 : i32
    %c0_i32_1 = arith.constant 0 : i32
    return %c0_i32, %c0_i32_0 : i32, i32
  }
  func.func @transform_7(%arg0: i32) -> (i32, i32) {
    %c0_i32 = arith.constant 0 : i32
    %c0_i32_0 = arith.constant 0 : i32
    return %arg0, %c0_i32 : i32, i32
  }
}

</mosaic_0001>

<llo_original>
// kernel: tanhnet2_forward.1
$region0: #{tanhnet2_forward.1}
  #allocation0 [shape = 'u32[]', space=smem, size = 0x4, offset = 0x4, fixed_abs, tag = 'smem constant byte address 0x4 - core index']
  #allocation1 [shape = 'u32[144,128]{1,0:T(1,128)}', space=vmem, size = 0x12000, scoped, tag = 'internal scratch']
  %s0 = inlined_call_operand.vmem [shape: bf16[8,3072], index: 0, kind: input, shape index: {}]
  %s1 = inlined_call_operand.hbm [shape: bf16[3072,256], index: 1, kind: input, shape index: {}]
  %s2 = inlined_call_operand.hbm [shape: f32[1,256], index: 2, kind: input, shape index: {}]
  %s3 = inlined_call_operand.hbm [shape: bf16[256,256], index: 3, kind: input, shape index: {}]
  %s4 = inlined_call_operand.hbm [shape: f32[1,256], index: 4, kind: input, shape index: {}]
  %s5 = inlined_call_operand.hbm [shape: bf16[256,128], index: 5, kind: input, shape index: {}]
  %s6 = inlined_call_operand.hbm [shape: f32[1,128], index: 6, kind: input, shape index: {}]
  %s7 = inlined_call_operand.vmem [shape: f32[8,128], index: 7, kind: output, shape index: {}]
  %s8 = sld [smem:[#allocation0]]
  $region62: #{tanhnet2_forward.1} parent=0
    _
  %s10 = ssub.s32 1, %s8
  %s11 = scalar_select 0, %s10, %s8
  $region1: #{tanhnet2_forward.1} parent=0
    #allocation2 [shape = 'u8[1572864]{0}', space=vmem, size = 0x180000, scoped, tag = 'input window, operand 1, single buffered']
    #allocation3 [shape = 's32[1]{0}', space=sflag, size = 0x4, scoped, tag = 'scoped memory for tanhnet2_forward.1']
    #allocation4 [shape = 'u8[1024]{0}', space=vmem, size = 0x400, scoped, tag = 'input window, operand 2, single buffered']
    #allocation5 [shape = 's32[1]{0}', space=sflag, size = 0x4, scoped, tag = 'scoped memory for tanhnet2_forward.1']
    #allocation6 [shape = 'u8[131072]{0}', space=vmem, size = 0x20000, scoped, tag = 'input window, operand 3, single buffered']
    #allocation7 [shape = 'u8[1024]{0}', space=vmem, size = 0x400, scoped, tag = 'input window, operand 4, single buffered']
    #allocation8 [shape = 's32[1]{0}', space=sflag, size = 0x4, scoped, tag = 'scoped memory for tanhnet2_forward.1']
    #allocation9 [shape = 'u8[65536]{0}', space=vmem, size = 0x10000, scoped, tag = 'input window, operand 5, single buffered']
    #allocation10 [shape = 'u8[512]{0}', space=vmem, size = 0x400, scoped, tag = 'input window, operand 6, single buffered']
    #allocation11 [shape = 's32[1]{0}', space=sflag, size = 0x4, scoped, tag = 'scoped memory for tanhnet2_forward.1']
    %12 = vsyncpa [#allocation3], 0
    %13 = vsyncpa [#allocation5], 0
    %14 = vsyncpa [#allocation8], 0
    %15 = vsyncpa [#allocation11], 0
    // Predicated region
    $region2: #{tanhnet2_forward.1} parent=1 // pred_check
      _
    $region3: #{tanhnet2_forward.1} parent=1 // pred_check_branch
      %17 = sbr.rel (0) target = $region5
    $region4: #{tanhnet2_forward.1} parent=1 // pred_region
      _
    $region5: #{tanhnet2_forward.1} parent=1 // pred_fallthru
      _
    // Predicated region
    $region6: #{tanhnet2_forward.1} parent=1 // pred_check
      _
    $region7: #{tanhnet2_forward.1} parent=1 // pred_check_branch
      %19 = sbr.rel (0) target = $region9
    $region8: #{tanhnet2_forward.1} parent=1 // pred_region
      %s21 = ssub.s32 49152, 49152
      %22 = vsyncadd [#allocation3], %s21
      %s23 = sshll.u32 [#allocation2], 4
      %s24 = int_to_ptr.vmem [resolvable:$true] %s23
      %29 = dma.hbm_to_vmem [thread:$0]  %s1, 49152, %s24, [#allocation3], 128, 128, 8
    $region9: #{tanhnet2_forward.1} parent=1 // pred_fallthru
      _
    // Predicated region
    $region10: #{tanhnet2_forward.1} parent=1 // pred_check
      _
    $region11: #{tanhnet2_forward.1} parent=1 // pred_check_branch
      %31 = sbr.rel (0) target = $region13
    $region12: #{tanhnet2_forward.1} parent=1 // pred_region
      %s33 = ssub.s32 32, 32
      %34 = vsyncadd [#allocation5], %s33
      %s36 = sshll.u32 [#allocation4], 4
      %s37 = int_to_ptr.vmem [resolvable:$true] %s36
      %39 = dma.hbm_to_vmem [thread:$0]  %s2, 32, %s37, [#allocation5]
    $region13: #{tanhnet2_forward.1} parent=1 // pred_fallthru
      _
    // Predicated region
    $region14: #{tanhnet2_forward.1} parent=1 // pred_check
      _
    $region15: #{tanhnet2_forward.1} parent=1 // pred_check_branch
      %41 = sbr.rel (0) target = $region17
    $region16: #{tanhnet2_forward.1} parent=1 // pred_region
      %s43 = ssub.s32 4096, 4096
      %44 = vsyncadd [#allocation5], %s43
      %s45 = sshll.u32 [#allocation6], 4
      %s46 = int_to_ptr.vmem [resolvable:$true] %s45
      %51 = dma.hbm_to_vmem [thread:$0]  %s3, 4096, %s46, [#allocation5], 128, 128, 8
    $region17: #{tanhnet2_forward.1} parent=1 // pred_fallthru
      _
    // Predicated region
    $region18: #{tanhnet2_forward.1} parent=1 // pred_check
      _
    $region19: #{tanhnet2_forward.1} parent=1 // pred_check_branch
      %53 = sbr.rel (0) target = $region21
    $region20: #{tanhnet2_forward.1} parent=1 // pred_region
      %s55 = ssub.s32 32, 32
      %56 = vsyncadd [#allocation8], %s55
      %s58 = sshll.u32 [#allocation7], 4
      %s59 = int_to_ptr.vmem [resolvable:$true] %s58
      %61 = dma.hbm_to_vmem [thread:$0]  %s4, 32, %s59, [#allocation8]
    $region21: #{tanhnet2_forward.1} parent=1 // pred_fallthru
      _
    // Predicated region
    $region22: #{tanhnet2_forward.1} parent=1 // pred_check
      _
    $region23: #{tanhnet2_forward.1} parent=1 // pred_check_branch
      %63 = sbr.rel (0) target = $region25
    $region24: #{tanhnet2_forward.1} parent=1 // pred_region
      %s65 = ssub.s32 2048, 2048
      %66 = vsyncadd [#allocation8], %s65
      %s67 = sshll.u32 [#allocation9], 4
      %s68 = int_to_ptr.vmem [resolvable:$true] %s67
      %73 = dma.hbm_to_vmem [thread:$0]  %s5, 2048, %s68, [#allocation8], 64, 64, 4
    $region25: #{tanhnet2_forward.1} parent=1 // pred_fallthru
      _
    // Predicated region
    $region26: #{tanhnet2_forward.1} parent=1 // pred_check
      _
    $region27: #{tanhnet2_forward.1} parent=1 // pred_check_branch
      %75 = sbr.rel (0) target = $region29
    $region28: #{tanhnet2_forward.1} parent=1 // pred_region
      %s77 = ssub.s32 16, 16
      %78 = vsyncadd [#allocation11], %s77
      %s80 = sshll.u32 [#allocation10], 4
      %s81 = int_to_ptr.vmem [resolvable:$true] %s80
      %83 = dma.hbm_to_vmem [thread:$0]  %s6, 16, %s81, [#allocation11]
    $region29: #{tanhnet2_forward.1} parent=1 // pred_fallthru
      _
    // Predicated region
    $region30: #{tanhnet2_forward.1} parent=1 // pred_check
      _
    $region31: #{tanhnet2_forward.1} parent=1 // pred_check_branch
      %85 = sbr.rel (0) target = $region33
    $region32: #{tanhnet2_forward.1} parent=1 // pred_region
      %86 = dma.done [#allocation3], 49152
    $region33: #{tanhnet2_forward.1} parent=1 // pred_fallthru
      _
    // Predicated region
    $region34: #{tanhnet2_forward.1} parent=1 // pred_check
      _
    $region35: #{tanhnet2_forward.1} parent=1 // pred_check_branch
      %88 = sbr.rel (0) target = $region37
    $region36: #{tanhnet2_forward.1} parent=1 // pred_region
      %89 = dma.done [#allocation5], 32
    $region37: #{tanhnet2_forward.1} parent=1 // pred_fallthru
      _
    // Predicated region
    $region38: #{tanhnet2_forward.1} parent=1 // pred_check
      _
    $region39: #{tanhnet2_forward.1} parent=1 // pred_check_branch
      %91 = sbr.rel (0) target = $region41
    $region40: #{tanhnet2_forward.1} parent=1 // pred_region
      %92 = dma.done [#allocation5], 4096
    $region41: #{tanhnet2_forward.1} parent=1 // pred_fallthru
      _
    // Predicated region
    $region42: #{tanhnet2_forward.1} parent=1 // pred_check
      _
    $region43: #{tanhnet2_forward.1} parent=1 // pred_check_branch
      %94 = sbr.rel (0) target = $region45
    $region44: #{tanhnet2_forward.1} parent=1 // pred_region
      %95 = dma.done [#allocation8], 32
    $region45: #{tanhnet2_forward.1} parent=1 // pred_fallthru
      _
    // Predicated region
    $region46: #{tanhnet2_forward.1} parent=1 // pred_check
      _
    $region47: #{tanhnet2_forward.1} parent=1 // pred_check_branch
      %97 = sbr.rel (0) target = $region49
    $region48: #{tanhnet2_forward.1} parent=1 // pred_region
      %98 = dma.done [#allocation8], 2048
    $region49: #{tanhnet2_forward.1} parent=1 // pred_fallthru
      _
    // Predicated region
    $region50: #{tanhnet2_forward.1} parent=1 // pred_check
      _
    $region51: #{tanhnet2_forward.1} parent=1 // pred_check_branch
      %100 = sbr.rel (0) target = $region53
    $region52: #{tanhnet2_forward.1} parent=1 // pred_region
      %101 = dma.done [#allocation11], 16
    $region53: #{tanhnet2_forward.1} parent=1 // pred_fallthru
      _
    %v103 = vld [vmem:[%s0] sm:$0xff]
    %v104 = vld [vmem:[%s0 + $0x8] sm:$0xff]
    %v105 = vld [vmem:[%s0 + $0x10] sm:$0xff]
    %v106 = vld [vmem:[%s0 + $0x18] sm:$0xff]
    %v107 = vld [vmem:[%s0 + $0x20] sm:$0xff]
    %v108 = vld [vmem:[%s0 + $0x28] sm:$0xff]
    %v109 = vld [vmem:[%s0 + $0x30] sm:$0xff]
    %v110 = vld [vmem:[%s0 + $0x38] sm:$0xff]
    %v111 = vld [vmem:[%s0 + $0x40] sm:$0xff]
    %v112 = vld [vmem:[%s0 + $0x48] sm:$0xff]
    %v113 = vld [vmem:[%s0 + $0x50] sm:$0xff]
    %v114 = vld [vmem:[%s0 + $0x58] sm:$0xff]
    %v115 = vld [vmem:[#allocation2] sm:$0xff]
    %v116 = vld [vmem:[#allocation2 + $0x8] sm:$0xff]
    %v117 = vld [vmem:[#allocation2 + $0x10] sm:$0xff]
    %v118 = vld [vmem:[#allocation2 + $0x18] sm:$0xff]
    %v119 = vld [vmem:[#allocation2 + $0x20] sm:$0xff]
    %v120 = vld [vmem:[#allocation2 + $0x28] sm:$0xff]
    %v121 = vld [vmem:[#allocation2 + $0x30] sm:$0xff]
    %v122 = vld [vmem:[#allocation2 + $0x38] sm:$0xff]
    %v123 = vld [vmem:[#allocation2 + $0x40] sm:$0xff]
    %v124 = vld [vmem:[#allocation2 + $0x48] sm:$0xff]
    %v125 = vld [vmem:[#allocation2 + $0x50] sm:$0xff]
    %v126 = vld [vmem:[#allocation2 + $0x58] sm:$0xff]
    %v127 = vld [vmem:[#allocation2 + $0x60] sm:$0xff]
    %v128 = vld [vmem:[#allocation2 + $0x68] sm:$0xff]
    %v129 = vld [vmem:[#allocation2 + $0x70] sm:$0xff]
    %v130 = vld [vmem:[#allocation2 + $0x78] sm:$0xff]
    %v131 = vld [vmem:[#allocation2 + $0x80] sm:$0xff]
    %v132 = vld [vmem:[#allocation2 + $0x88] sm:$0xff]
    %v133 = vld [vmem:[#allocation2 + $0x90] sm:$0xff]
    %v134 = vld [vmem:[#allocation2 + $0x98] sm:$0xff]
    %v135 = vld [vmem:[#allocation2 + $0xa0] sm:$0xff]
    %v136 = vld [vmem:[#allocation2 + $0xa8] sm:$0xff]
    %v137 = vld [vmem:[#allocation2 + $0xb0] sm:$0xff]
    %v138 = vld [vmem:[#allocation2 + $0xb8] sm:$0xff]
    %v139 = vld [vmem:[#allocation2 + $0xc0] sm:$0xff]
    %v140 = vld [vmem:[#allocation2 + $0xc8] sm:$0xff]
    %v141 = vld [vmem:[#allocation2 + $0xd0] sm:$0xff]
    %v142 = vld [vmem:[#allocation2 + $0xd8] sm:$0xff]
    %v143 = vld [vmem:[#allocation2 + $0xe0] sm:$0xff]
    %v144 = vld [vmem:[#allocation2 + $0xe8] sm:$0xff]
    %v145 = vld [vmem:[#allocation2 + $0xf0] sm:$0xff]
    %v146 = vld [vmem:[#allocation2 + $0xf8] sm:$0xff]
    %v147 = vld [vmem:[#allocation2 + $0x100] sm:$0xff]
    %v148 = vld [vmem:[#allocation2 + $0x108] sm:$0xff]
    %v149 = vld [vmem:[#allocation2 + $0x110] sm:$0xff]
    %v150 = vld [vmem:[#allocation2 + $0x118] sm:$0xff]
    %v151 = vld [vmem:[#allocation2 + $0x120] sm:$0xff]
    %v152 = vld [vmem:[#allocation2 + $0x128] sm:$0xff]
    %v153 = vld [vmem:[#allocation2 + $0x130] sm:$0xff]
    %v154 = vld [vmem:[#allocation2 + $0x138] sm:$0xff]
    %v155 = vld [vmem:[#allocation2 + $0x140] sm:$0xff]
    %v156 = vld [vmem:[#allocation2 + $0x148] sm:$0xff]
    %v157 = vld [vmem:[#allocation2 + $0x150] sm:$0xff]
    %v158 = vld [vmem:[#allocation2 + $0x158] sm:$0xff]
    %v159 = vld [vmem:[#allocation2 + $0x160] sm:$0xff]
    %v160 = vld [vmem:[#allocation2 + $0x168] sm:$0xff]
    %v161 = vld [vmem:[#allocation2 + $0x170] sm:$0xff]
    %v162 = vld [vmem:[#allocation2 + $0x178] sm:$0xff]
    %v163 = vld [vmem:[#allocation2 + $0x180] sm:$0xff]
    %v164 = vld [vmem:[#allocation2 + $0x188] sm:$0xff]
    %v165 = vld [vmem:[#allocation2 + $0x190] sm:$0xff]
    %v166 = vld [vmem:[#allocation2 + $0x198] sm:$0xff]
    %v167 = vld [vmem:[#allocation2 + $0x1a0] sm:$0xff]
    %v168 = vld [vmem:[#allocation2 + $0x1a8] sm:$0xff]
    %v169 = vld [vmem:[#allocation2 + $0x1b0] sm:$0xff]
    %v170 = vld [vmem:[#allocation2 + $0x1b8] sm:$0xff]
    %v171 = vld [vmem:[#allocation2 + $0x1c0] sm:$0xff]
    %v172 = vld [vmem:[#allocation2 + $0x1c8] sm:$0xff]
    %v173 = vld [vmem:[#allocation2 + $0x1d0] sm:$0xff]
    %v174 = vld [vmem:[#allocation2 + $0x1d8] sm:$0xff]
    %v175 = vld [vmem:[#allocation2 + $0x1e0] sm:$0xff]
    %v176 = vld [vmem:[#allocation2 + $0x1e8] sm:$0xff]
    %v177 = vld [vmem:[#allocation2 + $0x1f0] sm:$0xff]
    %v178 = vld [vmem:[#allocation2 + $0x1f8] sm:$0xff]
    %v179 = vld [vmem:[#allocation2 + $0x200] sm:$0xff]
    %v180 = vld [vmem:[#allocation2 + $0x208] sm:$0xff]
    %v181 = vld [vmem:[#allocation2 + $0x210] sm:$0xff]
    %v182 = vld [vmem:[#allocation2 + $0x218] sm:$0xff]
    %v183 = vld [vmem:[#allocation2 + $0x220] sm:$0xff]
    %v184 = vld [vmem:[#allocation2 + $0x228] sm:$0xff]
    %v185 = vld [vmem:[#allocation2 + $0x230] sm:$0xff]
    %v186 = vld [vmem:[#allocation2 + $0x238] sm:$0xff]
    %v187 = vld [vmem:[#allocation2 + $0x240] sm:$0xff]
    %v188 = vld [vmem:[#allocation2 + $0x248] sm:$0xff]
    %v189 = vld [vmem:[#allocation2 + $0x250] sm:$0xff]
    %v190 = vld [vmem:[#allocation2 + $0x258] sm:$0xff]
    %v191 = vld [vmem:[#allocation2 + $0x260] sm:$0xff]
    %v192 = vld [vmem:[#allocation2 + $0x268] sm:$0xff]
    %v193 = vld [vmem:[#allocation2 + $0x270] sm:$0xff]
    %v194 = vld [vmem:[#allocation2 + $0x278] sm:$0xff]
    %v195 = vld [vmem:[#allocation2 + $0x280] sm:$0xff]
    %v196 = vld [vmem:[#allocation2 + $0x288] sm:$0xff]
    %v197 = vld [vmem:[#allocation2 + $0x290] sm:$0xff]
    %v198 = vld [vmem:[#allocation2 + $0x298] sm:$0xff]
    %v199 = vld [vmem:[#allocation2 + $0x2a0] sm:$0xff]
    %v200 = vld [vmem:[#allocation2 + $0x2a8] sm:$0xff]
    %v201 = vld [vmem:[#allocation2 + $0x2b0] sm:$0xff]
    %v202 = vld [vmem:[#allocation2 + $0x2b8] sm:$0xff]
    %v203 = vld [vmem:[#allocation2 + $0x2c0] sm:$0xff]
    %v204 = vld [vmem:[#allocation2 + $0x2c8] sm:$0xff]
    %v205 = vld [vmem:[#allocation2 + $0x2d0] sm:$0xff]
    %v206 = vld [vmem:[#allocation2 + $0x2d8] sm:$0xff]
    %v207 = vld [vmem:[#allocation2 + $0x2e0] sm:$0xff]
    %v208 = vld [vmem:[#allocation2 + $0x2e8] sm:$0xff]
    %v209 = vld [vmem:[#allocation2 + $0x2f0] sm:$0xff]
    %v210 = vld [vmem:[#allocation2 + $0x2f8] sm:$0xff]
    %v211 = vld [vmem:[#allocation2 + $0x300] sm:$0xff]
    %v212 = vld [vmem:[#allocation2 + $0x308] sm:$0xff]
    %v213 = vld [vmem:[#allocation2 + $0x310] sm:$0xff]
    %v214 = vld [vmem:[#allocation2 + $0x318] sm:$0xff]
    %v215 = vld [vmem:[#allocation2 + $0x320] sm:$0xff]
    %v216 = vld [vmem:[#allocation2 + $0x328] sm:$0xff]
    %v217 = vld [vmem:[#allocation2 + $0x330] sm:$0xff]
    %v218 = vld [vmem:[#allocation2 + $0x338] sm:$0xff]
    %v219 = vld [vmem:[#allocation2 + $0x340] sm:$0xff]
    %v220 = vld [vmem:[#allocation2 + $0x348] sm:$0xff]
    %v221 = vld [vmem:[#allocation2 + $0x350] sm:$0xff]
    %v222 = vld [vmem:[#allocation2 + $0x358] sm:$0xff]
    %v223 = vld [vmem:[#allocation2 + $0x360] sm:$0xff]
    %v224 = vld [vmem:[#allocation2 + $0x368] sm:$0xff]
    %v225 = vld [vmem:[#allocation2 + $0x370] sm:$0xff]
    %v226 = vld [vmem:[#allocation2 + $0x378] sm:$0xff]
    %v227 = vld [vmem:[#allocation2 + $0x380] sm:$0xff]
    %v228 = vld [vmem:[#allocation2 + $0x388] sm:$0xff]
    %v229 = vld [vmem:[#allocation2 + $0x390] sm:$0xff]
    %v230 = vld [vmem:[#allocation2 + $0x398] sm:$0xff]
    %v231 = vld [vmem:[#allocation2 + $0x3a0] sm:$0xff]
    %v232 = vld [vmem:[#allocation2 + $0x3a8] sm:$0xff]
    %v233 = vld [vmem:[#allocation2 + $0x3b0] sm:$0xff]
    %v234 = vld [vmem:[#allocation2 + $0x3b8] sm:$0xff]
    %v235 = vld [vmem:[#allocation2 + $0x3c0] sm:$0xff]
    %v236 = vld [vmem:[#allocation2 + $0x3c8] sm:$0xff]
    %v237 = vld [vmem:[#allocation2 + $0x3d0] sm:$0xff]
    %v238 = vld [vmem:[#allocation2 + $0x3d8] sm:$0xff]
    %v239 = vld [vmem:[#allocation2 + $0x3e0] sm:$0xff]
    %v240 = vld [vmem:[#allocation2 + $0x3e8] sm:$0xff]
    %v241 = vld [vmem:[#allocation2 + $0x3f0] sm:$0xff]
    %v242 = vld [vmem:[#allocation2 + $0x3f8] sm:$0xff]
    %v243 = vld [vmem:[#allocation2 + $0x400] sm:$0xff]
    %v244 = vld [vmem:[#allocation2 + $0x408] sm:$0xff]
    %v245 = vld [vmem:[#allocation2 + $0x410] sm:$0xff]
    %v246 = vld [vmem:[#allocation2 + $0x418] sm:$0xff]
    %v247 = vld [vmem:[#allocation2 + $0x420] sm:$0xff]
    %v248 = vld [vmem:[#allocation2 + $0x428] sm:$0xff]
    %v249 = vld [vmem:[#allocation2 + $0x430] sm:$0xff]
    %v250 = vld [vmem:[#allocation2 + $0x438] sm:$0xff]
    %v251 = vld [vmem:[#allocation2 + $0x440] sm:$0xff]
    %v252 = vld [vmem:[#allocation2 + $0x448] sm:$0xff]
    %v253 = vld [vmem:[#allocation2 + $0x450] sm:$0xff]
    %v254 = vld [vmem:[#allocation2 + $0x458] sm:$0xff]
    %v255 = vld [vmem:[#allocation2 + $0x460] sm:$0xff]
    %v256 = vld [vmem:[#allocation2 + $0x468] sm:$0xff]
    %v257 = vld [vmem:[#allocation2 + $0x470] sm:$0xff]
    %v258 = vld [vmem:[#allocation2 + $0x478] sm:$0xff]
    %v259 = vld [vmem:[#allocation2 + $0x480] sm:$0xff]
    %v260 = vld [vmem:[#allocation2 + $0x488] sm:$0xff]
    %v261 = vld [vmem:[#allocation2 + $0x490] sm:$0xff]
    %v262 = vld [vmem:[#allocation2 + $0x498] sm:$0xff]
    %v263 = vld [vmem:[#allocation2 + $0x4a0] sm:$0xff]
    %v264 = vld [vmem:[#allocation2 + $0x4a8] sm:$0xff]
    %v265 = vld [vmem:[#allocation2 + $0x4b0] sm:$0xff]
    %v266 = vld [vmem:[#allocation2 + $0x4b8] sm:$0xff]
    %v267 = vld [vmem:[#allocation2 + $0x4c0] sm:$0xff]
    %v268 = vld [vmem:[#allocation2 + $0x4c8] sm:$0xff]
    %v269 = vld [vmem:[#allocation2 + $0x4d0] sm:$0xff]
    %v270 = vld [vmem:[#allocation2 + $0x4d8] sm:$0xff]
    %v271 = vld [vmem:[#allocation2 + $0x4e0] sm:$0xff]
    %v272 = vld [vmem:[#allocation2 + $0x4e8] sm:$0xff]
    %v273 = vld [vmem:[#allocation2 + $0x4f0] sm:$0xff]
    %v274 = vld [vmem:[#allocation2 + $0x4f8] sm:$0xff]
    %v275 = vld [vmem:[#allocation2 + $0x500] sm:$0xff]
    %v276 = vld [vmem:[#allocation2 + $0x508] sm:$0xff]
    %v277 = vld [vmem:[#allocation2 + $0x510] sm:$0xff]
    %v278 = vld [vmem:[#allocation2 + $0x518] sm:$0xff]
    %v279 = vld [vmem:[#allocation2 + $0x520] sm:$0xff]
    %v280 = vld [vmem:[#allocation2 + $0x528] sm:$0xff]
    %v281 = vld [vmem:[#allocation2 + $0x530] sm:$0xff]
    %v282 = vld [vmem:[#allocation2 + $0x538] sm:$0xff]
    %v283 = vld [vmem:[#allocation2 + $0x540] sm:$0xff]
    %v284 = vld [vmem:[#allocation2 + $0x548] sm:$0xff]
    %v285 = vld [vmem:[#allocation2 + $0x550] sm:$0xff]
    %v286 = vld [vmem:[#allocation2 + $0x558] sm:$0xff]
    %v287 = vld [vmem:[#allocation2 + $0x560] sm:$0xff]
    %v288 = vld [vmem:[#allocation2 + $0x568] sm:$0xff]
    %v289 = vld [vmem:[#allocation2 + $0x570] sm:$0xff]
    %v290 = vld [vmem:[#allocation2 + $0x578] sm:$0xff]
    %v291 = vld [vmem:[#allocation2 + $0x580] sm:$0xff]
    %v292 = vld [vmem:[#allocation2 + $0x588] sm:$0xff]
    %v293 = vld [vmem:[#allocation2 + $0x590] sm:$0xff]
    %v294 = vld [vmem:[#allocation2 + $0x598] sm:$0xff]
    %v295 = vld [vmem:[#allocation2 + $0x5a0] sm:$0xff]
    %v296 = vld [vmem:[#allocation2 + $0x5a8] sm:$0xff]
    %v297 = vld [vmem:[#allocation2 + $0x5b0] sm:$0xff]
    %v298 = vld [vmem:[#allocation2 + $0x5b8] sm:$0xff]
    %v299 = vld [vmem:[#allocation2 + $0x5c0] sm:$0xff]
    %v300 = vld [vmem:[#allocation2 + $0x5c8] sm:$0xff]
    %v301 = vld [vmem:[#allocation2 + $0x5d0] sm:$0xff]
    %v302 = vld [vmem:[#allocation2 + $0x5d8] sm:$0xff]
    %v303 = vld [vmem:[#allocation2 + $0x5e0] sm:$0xff]
    %v304 = vld [vmem:[#allocation2 + $0x5e8] sm:$0xff]
    %v305 = vld [vmem:[#allocation2 + $0x5f0] sm:$0xff]
    %v306 = vld [vmem:[#allocation2 + $0x5f8] sm:$0xff]
    %v307 = vld [vmem:[#allocation2 + $0x600] sm:$0xff]
    %v308 = vld [vmem:[#allocation2 + $0x608] sm:$0xff]
    %v309 = vld [vmem:[#allocation2 + $0x610] sm:$0xff]
    %v310 = vld [vmem:[#allocation2 + $0x618] sm:$0xff]
    %v311 = vld [vmem:[#allocation2 + $0x620] sm:$0xff]
    %v312 = vld [vmem:[#allocation2 + $0x628] sm:$0xff]
    %v313 = vld [vmem:[#allocation2 + $0x630] sm:$0xff]
    %v314 = vld [vmem:[#allocation2 + $0x638] sm:$0xff]
    %v315 = vld [vmem:[#allocation2 + $0x640] sm:$0xff]
    %v316 = vld [vmem:[#allocation2 + $0x648] sm:$0xff]
    %v317 = vld [vmem:[#allocation2 + $0x650] sm:$0xff]
    %v318 = vld [vmem:[#allocation2 + $0x658] sm:$0xff]
    %v319 = vld [vmem:[#allocation2 + $0x660] sm:$0xff]
    %v320 = vld [vmem:[#allocation2 + $0x668] sm:$0xff]
    %v321 = vld [vmem:[#allocation2 + $0x670] sm:$0xff]
    %v322 = vld [vmem:[#allocation2 + $0x678] sm:$0xff]
    %v323 = vld [vmem:[#allocation2 + $0x680] sm:$0xff]
    %v324 = vld [vmem:[#allocation2 + $0x688] sm:$0xff]
    %v325 = vld [vmem:[#allocation2 + $0x690] sm:$0xff]
    %v326 = vld [vmem:[#allocation2 + $0x698] sm:$0xff]
    %v327 = vld [vmem:[#allocation2 + $0x6a0] sm:$0xff]
    %v328 = vld [vmem:[#allocation2 + $0x6a8] sm:$0xff]
    %v329 = vld [vmem:[#allocation2 + $0x6b0] sm:$0xff]
    %v330 = vld [vmem:[#allocation2 + $0x6b8] sm:$0xff]
    %v331 = vld [vmem:[#allocation2 + $0x6c0] sm:$0xff]
    %v332 = vld [vmem:[#allocation2 + $0x6c8] sm:$0xff]
    %v333 = vld [vmem:[#allocation2 + $0x6d0] sm:$0xff]
    %v334 = vld [vmem:[#allocation2 + $0x6d8] sm:$0xff]
    %v335 = vld [vmem:[#allocation2 + $0x6e0] sm:$0xff]
    %v336 = vld [vmem:[#allocation2 + $0x6e8] sm:$0xff]
    %v337 = vld [vmem:[#allocation2 + $0x6f0] sm:$0xff]
    %v338 = vld [vmem:[#allocation2 + $0x6f8] sm:$0xff]
    %v339 = vld [vmem:[#allocation2 + $0x700] sm:$0xff]
    %v340 = vld [vmem:[#allocation2 + $0x708] sm:$0xff]
    %v341 = vld [vmem:[#allocation2 + $0x710] sm:$0xff]
    %v342 = vld [vmem:[#allocation2 + $0x718] sm:$0xff]
    %v343 = vld [vmem:[#allocation2 + $0x720] sm:$0xff]
    %v344 = vld [vmem:[#allocation2 + $0x728] sm:$0xff]
    %v345 = vld [vmem:[#allocation2 + $0x730] sm:$0xff]
    %v346 = vld [vmem:[#allocation2 + $0x738] sm:$0xff]
    %v347 = vld [vmem:[#allocation2 + $0x740] sm:$0xff]
    %v348 = vld [vmem:[#allocation2 + $0x748] sm:$0xff]
    %v349 = vld [vmem:[#allocation2 + $0x750] sm:$0xff]
    %v350 = vld [vmem:[#allocation2 + $0x758] sm:$0xff]
    %v351 = vld [vmem:[#allocation2 + $0x760] sm:$0xff]
    %v352 = vld [vmem:[#allocation2 + $0x768] sm:$0xff]
    %v353 = vld [vmem:[#allocation2 + $0x770] sm:$0xff]
    %v354 = vld [vmem:[#allocation2 + $0x778] sm:$0xff]
    %v355 = vld [vmem:[#allocation2 + $0x780] sm:$0xff]
    %v356 = vld [vmem:[#allocation2 + $0x788] sm:$0xff]
    %v357 = vld [vmem:[#allocation2 + $0x790] sm:$0xff]
    %v358 = vld [vmem:[#allocation2 + $0x798] sm:$0xff]
    %v359 = vld [vmem:[#allocation2 + $0x7a0] sm:$0xff]
    %v360 = vld [vmem:[#allocation2 + $0x7a8] sm:$0xff]
    %v361 = vld [vmem:[#allocation2 + $0x7b0] sm:$0xff]
    %v362 = vld [vmem:[#allocation2 + $0x7b8] sm:$0xff]
    %v363 = vld [vmem:[#allocation2 + $0x7c0] sm:$0xff]
    %v364 = vld [vmem:[#allocation2 + $0x7c8] sm:$0xff]
    %v365 = vld [vmem:[#allocation2 + $0x7d0] sm:$0xff]
    %v366 = vld [vmem:[#allocation2 + $0x7d8] sm:$0xff]
    %v367 = vld [vmem:[#allocation2 + $0x7e0] sm:$0xff]
    %v368 = vld [vmem:[#allocation2 + $0x7e8] sm:$0xff]
    %v369 = vld [vmem:[#allocation2 + $0x7f0] sm:$0xff]
    %v370 = vld [vmem:[#allocation2 + $0x7f8] sm:$0xff]
    %v371 = vld [vmem:[#allocation2 + $0x800] sm:$0xff]
    %v372 = vld [vmem:[#allocation2 + $0x808] sm:$0xff]
    %v373 = vld [vmem:[#allocation2 + $0x810] sm:$0xff]
    %v374 = vld [vmem:[#allocation2 + $0x818] sm:$0xff]
    %v375 = vld [vmem:[#allocation2 + $0x820] sm:$0xff]
    %v376 = vld [vmem:[#allocation2 + $0x828] sm:$0xff]
    %v377 = vld [vmem:[#allocation2 + $0x830] sm:$0xff]
    %v378 = vld [vmem:[#allocation2 + $0x838] sm:$0xff]
    %v379 = vld [vmem:[#allocation2 + $0x840] sm:$0xff]
    %v380 = vld [vmem:[#allocation2 + $0x848] sm:$0xff]
    %v381 = vld [vmem:[#allocation2 + $0x850] sm:$0xff]
    %v382 = vld [vmem:[#allocation2 + $0x858] sm:$0xff]
    %v383 = vld [vmem:[#allocation2 + $0x860] sm:$0xff]
    %v384 = vld [vmem:[#allocation2 + $0x868] sm:$0xff]
    %v385 = vld [vmem:[#allocation2 + $0x870] sm:$0xff]
    %v386 = vld [vmem:[#allocation2 + $0x878] sm:$0xff]
    %v387 = vld [vmem:[#allocation2 + $0x880] sm:$0xff]
    %v388 = vld [vmem:[#allocation2 + $0x888] sm:$0xff]
    %v389 = vld [vmem:[#allocation2 + $0x890] sm:$0xff]
    %v390 = vld [vmem:[#allocation2 + $0x898] sm:$0xff]
    %v391 = vld [vmem:[#allocation2 + $0x8a0] sm:$0xff]
    %v392 = vld [vmem:[#allocation2 + $0x8a8] sm:$0xff]
    %v393 = vld [vmem:[#allocation2 + $0x8b0] sm:$0xff]
    %v394 = vld [vmem:[#allocation2 + $0x8b8] sm:$0xff]
    %v395 = vld [vmem:[#allocation2 + $0x8c0] sm:$0xff]
    %v396 = vld [vmem:[#allocation2 + $0x8c8] sm:$0xff]
    %v397 = vld [vmem:[#allocation2 + $0x8d0] sm:$0xff]
    %v398 = vld [vmem:[#allocation2 + $0x8d8] sm:$0xff]
    %v399 = vld [vmem:[#allocation2 + $0x8e0] sm:$0xff]
    %v400 = vld [vmem:[#allocation2 + $0x8e8] sm:$0xff]
    %v401 = vld [vmem:[#allocation2 + $0x8f0] sm:$0xff]
    %v402 = vld [vmem:[#allocation2 + $0x8f8] sm:$0xff]
    %v403 = vld [vmem:[#allocation2 + $0x900] sm:$0xff]
    %v404 = vld [vmem:[#allocation2 + $0x908] sm:$0xff]
    %v405 = vld [vmem:[#allocation2 + $0x910] sm:$0xff]
    %v406 = vld [vmem:[#allocation2 + $0x918] sm:$0xff]
    %v407 = vld [vmem:[#allocation2 + $0x920] sm:$0xff]
    %v408 = vld [vmem:[#allocation2 + $0x928] sm:$0xff]
    %v409 = vld [vmem:[#allocation2 + $0x930] sm:$0xff]
    %v410 = vld [vmem:[#allocation2 + $0x938] sm:$0xff]
    %v411 = vld [vmem:[#allocation2 + $0x940] sm:$0xff]
    %v412 = vld [vmem:[#allocation2 + $0x948] sm:$0xff]
    %v413 = vld [vmem:[#allocation2 + $0x950] sm:$0xff]
    %v414 = vld [vmem:[#allocation2 + $0x958] sm:$0xff]
    %v415 = vld [vmem:[#allocation2 + $0x960] sm:$0xff]
    %v416 = vld [vmem:[#allocation2 + $0x968] sm:$0xff]
    %v417 = vld [vmem:[#allocation2 + $0x970] sm:$0xff]
    %v418 = vld [vmem:[#allocation2 + $0x978] sm:$0xff]
    %v419 = vld [vmem:[#allocation2 + $0x980] sm:$0xff]
    %v420 = vld [vmem:[#allocation2 + $0x988] sm:$0xff]
    %v421 = vld [vmem:[#allocation2 + $0x990] sm:$0xff]
    %v422 = vld [vmem:[#allocation2 + $0x998] sm:$0xff]
    %v423 = vld [vmem:[#allocation2 + $0x9a0] sm:$0xff]
    %v424 = vld [vmem:[#allocation2 + $0x9a8] sm:$0xff]
    %v425 = vld [vmem:[#allocation2 + $0x9b0] sm:$0xff]
    %v426 = vld [vmem:[#allocation2 + $0x9b8] sm:$0xff]
    %v427 = vld [vmem:[#allocation2 + $0x9c0] sm:$0xff]
    %v428 = vld [vmem:[#allocation2 + $0x9c8] sm:$0xff]
    %v429 = vld [vmem:[#allocation2 + $0x9d0] sm:$0xff]
    %v430 = vld [vmem:[#allocation2 + $0x9d8] sm:$0xff]
    %v431 = vld [vmem:[#allocation2 + $0x9e0] sm:$0xff]
    %v432 = vld [vmem:[#allocation2 + $0x9e8] sm:$0xff]
    %v433 = vld [vmem:[#allocation2 + $0x9f0] sm:$0xff]
    %v434 = vld [vmem:[#allocation2 + $0x9f8] sm:$0xff]
    %v435 = vld [vmem:[#allocation2 + $0xa00] sm:$0xff]
    %v436 = vld [vmem:[#allocation2 + $0xa08] sm:$0xff]
    %v437 = vld [vmem:[#allocation2 + $0xa10] sm:$0xff]
    %v438 = vld [vmem:[#allocation2 + $0xa18] sm:$0xff]
    %v439 = vld [vmem:[#allocation2 + $0xa20] sm:$0xff]
    %v440 = vld [vmem:[#allocation2 + $0xa28] sm:$0xff]
    %v441 = vld [vmem:[#allocation2 + $0xa30] sm:$0xff]
    %v442 = vld [vmem:[#allocation2 + $0xa38] sm:$0xff]
    %v443 = vld [vmem:[#allocation2 + $0xa40] sm:$0xff]
    %v444 = vld [vmem:[#allocation2 + $0xa48] sm:$0xff]
    %v445 = vld [vmem:[#allocation2 + $0xa50] sm:$0xff]
    %v446 = vld [vmem:[#allocation2 + $0xa58] sm:$0xff]
    %v447 = vld [vmem:[#allocation2 + $0xa60] sm:$0xff]
    %v448 = vld [vmem:[#allocation2 + $0xa68] sm:$0xff]
    %v449 = vld [vmem:[#allocation2 + $0xa70] sm:$0xff]
    %v450 = vld [vmem:[#allocation2 + $0xa78] sm:$0xff]
    %v451 = vld [vmem:[#allocation2 + $0xa80] sm:$0xff]
    %v452 = vld [vmem:[#allocation2 + $0xa88] sm:$0xff]
    %v453 = vld [vmem:[#allocation2 + $0xa90] sm:$0xff]
    %v454 = vld [vmem:[#allocation2 + $0xa98] sm:$0xff]
    %v455 = vld [vmem:[#allocation2 + $0xaa0] sm:$0xff]
    %v456 = vld [vmem:[#allocation2 + $0xaa8] sm:$0xff]
    %v457 = vld [vmem:[#allocation2 + $0xab0] sm:$0xff]
    %v458 = vld [vmem:[#allocation2 + $0xab8] sm:$0xff]
    %v459 = vld [vmem:[#allocation2 + $0xac0] sm:$0xff]
    %v460 = vld [vmem:[#allocation2 + $0xac8] sm:$0xff]
    %v461 = vld [vmem:[#allocation2 + $0xad0] sm:$0xff]
    %v462 = vld [vmem:[#allocation2 + $0xad8] sm:$0xff]
    %v463 = vld [vmem:[#allocation2 + $0xae0] sm:$0xff]
    %v464 = vld [vmem:[#allocation2 + $0xae8] sm:$0xff]
    %v465 = vld [vmem:[#allocation2 + $0xaf0] sm:$0xff]
    %v466 = vld [vmem:[#allocation2 + $0xaf8] sm:$0xff]
    %v467 = vld [vmem:[#allocation2 + $0xb00] sm:$0xff]
    %v468 = vld [vmem:[#allocation2 + $0xb08] sm:$0xff]
    %v469 = vld [vmem:[#allocation2 + $0xb10] sm:$0xff]
    %v470 = vld [vmem:[#allocation2 + $0xb18] sm:$0xff]
    %v471 = vld [vmem:[#allocation2 + $0xb20] sm:$0xff]
    %v472 = vld [vmem:[#allocation2 + $0xb28] sm:$0xff]
    %v473 = vld [vmem:[#allocation2 + $0xb30] sm:$0xff]
    %v474 = vld [vmem:[#allocation2 + $0xb38] sm:$0xff]
    %v475 = vld [vmem:[#allocation2 + $0xb40] sm:$0xff]
    %v476 = vld [vmem:[#allocation2 + $0xb48] sm:$0xff]
    %v477 = vld [vmem:[#allocation2 + $0xb50] sm:$0xff]
    %v478 = vld [vmem:[#allocation2 + $0xb58] sm:$0xff]
    %v479 = vld [vmem:[#allocation2 + $0xb60] sm:$0xff]
    %v480 = vld [vmem:[#allocation2 + $0xb68] sm:$0xff]
    %v481 = vld [vmem:[#allocation2 + $0xb70] sm:$0xff]
    %v482 = vld [vmem:[#allocation2 + $0xb78] sm:$0xff]
    %v483 = vld [vmem:[#allocation2 + $0xb80] sm:$0xff]
    %v484 = vld [vmem:[#allocation2 + $0xb88] sm:$0xff]
    %v485 = vld [vmem:[#allocation2 + $0xb90] sm:$0xff]
    %v486 = vld [vmem:[#allocation2 + $0xb98] sm:$0xff]
    %v487 = vld [vmem:[#allocation2 + $0xba0] sm:$0xff]
    %v488 = vld [vmem:[#allocation2 + $0xba8] sm:$0xff]
    %v489 = vld [vmem:[#allocation2 + $0xbb0] sm:$0xff]
    %v490 = vld [vmem:[#allocation2 + $0xbb8] sm:$0xff]
    %v491 = vld [vmem:[#allocation2 + $0xbc0] sm:$0xff]
    %v492 = vld [vmem:[#allocation2 + $0xbc8] sm:$0xff]
    %v493 = vld [vmem:[#allocation2 + $0xbd0] sm:$0xff]
    %v494 = vld [vmem:[#allocation2 + $0xbd8] sm:$0xff]
    %v495 = vld [vmem:[#allocation2 + $0xbe0] sm:$0xff]
    %v496 = vld [vmem:[#allocation2 + $0xbe8] sm:$0xff]
    %v497 = vld [vmem:[#allocation2 + $0xbf0] sm:$0xff]
    %v498 = vld [vmem:[#allocation2 + $0xbf8] sm:$0xff]
    %v499 = vld [vmem:[#allocation4] sm:$0x3]
    %v501 = vlaneseq
    %v502 = vshrl.u32 %v501, 7
    %v503 = vsub.s32 0, %v502
    %v504 = vrot.slane %v499, %v503
    %v505 = vlaneseq
    %v506 = vshrl.u32 %v505, 7
    %v507 = vsub.s32 1, %v506
    %v508 = vrot.slane %v499, %v507
    %v523 = vunpack.c.l.b16 %v103
    %v524 = vunpack.c.h.b16 %v103
    %v525 = vunpack.c.l.b16 %v104
    %v526 = vunpack.c.h.b16 %v104
    %v527 = vunpack.c.l.b16 %v105
    %v528 = vunpack.c.h.b16 %v105
    %v529 = vunpack.c.l.b16 %v106
    %v530 = vunpack.c.h.b16 %v106
    %v531 = vunpack.c.l.b16 %v107
    %v532 = vunpack.c.h.b16 %v107
    %v533 = vunpack.c.l.b16 %v108
    %v534 = vunpack.c.h.b16 %v108
    %v535 = vunpack.c.l.b16 %v109
    %v536 = vunpack.c.h.b16 %v109
    %v537 = vunpack.c.l.b16 %v110
    %v538 = vunpack.c.h.b16 %v110
    %v539 = vunpack.c.l.b16 %v111
    %v540 = vunpack.c.h.b16 %v111
    %v541 = vunpack.c.l.b16 %v112
    %v542 = vunpack.c.h.b16 %v112
    %v543 = vunpack.c.l.b16 %v113
    %v544 = vunpack.c.h.b16 %v113
    %v545 = vunpack.c.l.b16 %v114
    %v546 = vunpack.c.h.b16 %v114
    %v547 = vpack.c.b16 %v523, %v523
    %v548 = vpack.c.b16 %v524, %v524
    %v549 = vpack.c.b16 %v525, %v525
    %v550 = vpack.c.b16 %v526, %v526
    %v551 = vpack.c.b16 %v527, %v527
    %v552 = vpack.c.b16 %v528, %v528
    %v553 = vpack.c.b16 %v529, %v529
    %v554 = vpack.c.b16 %v530, %v530
    %v555 = vpack.c.b16 %v531, %v531
    %v556 = vpack.c.b16 %v532, %v532
    %v557 = vpack.c.b16 %v533, %v533
    %v558 = vpack.c.b16 %v534, %v534
    %v559 = vpack.c.b16 %v535, %v535
    %v560 = vpack.c.b16 %v536, %v536
    %v561 = vpack.c.b16 %v537, %v537
    %v562 = vpack.c.b16 %v538, %v538
    %v563 = vpack.c.b16 %v539, %v539
    %v564 = vpack.c.b16 %v540, %v540
    %v565 = vpack.c.b16 %v541, %v541
    %v566 = vpack.c.b16 %v542, %v542
    %v567 = vpack.c.b16 %v543, %v543
    %v568 = vpack.c.b16 %v544, %v544
    %v569 = vpack.c.b16 %v545, %v545
    %v570 = vpack.c.b16 %v546, %v546
    %v979 = vunpack.c.l.b16 %v115
    %v980 = vunpack.c.h.b16 %v115
    %v981 = vunpack.c.l.b16 %v116
    %v982 = vunpack.c.h.b16 %v116
    %v983 = vunpack.c.l.b16 %v117
    %v984 = vunpack.c.h.b16 %v117
    %v985 = vunpack.c.l.b16 %v118
    %v986 = vunpack.c.h.b16 %v118
    %v987 = vunpack.c.l.b16 %v119
    %v988 = vunpack.c.h.b16 %v119
    %v989 = vunpack.c.l.b16 %v120
    %v990 = vunpack.c.h.b16 %v120
    %v991 = vunpack.c.l.b16 %v121
    %v992 = vunpack.c.h.b16 %v121
    %v993 = vunpack.c.l.b16 %v122
    %v994 = vunpack.c.h.b16 %v122
    %v995 = vunpack.c.l.b16 %v123
    %v996 = vunpack.c.h.b16 %v123
    %v997 = vunpack.c.l.b16 %v124
    %v998 = vunpack.c.h.b16 %v124
    %v999 = vunpack.c.l.b16 %v125
    %v1000 = vunpack.c.h.b16 %v125
    %v1001 = vunpack.c.l.b16 %v126
    %v1002 = vunpack.c.h.b16 %v126
    %v1003 = vunpack.c.l.b16 %v127
    %v1004 = vunpack.c.h.b16 %v127
    %v1005 = vunpack.c.l.b16 %v128
    %v1006 = vunpack.c.h.b16 %v128
    %v1007 = vunpack.c.l.b16 %v129
    %v1008 = vunpack.c.h.b16 %v129
    %v1009 = vunpack.c.l.b16 %v130
    %v1010 = vunpack.c.h.b16 %v130
    %v1011 = vunpack.c.l.b16 %v131
    %v1012 = vunpack.c.h.b16 %v131
    %v1013 = vunpack.c.l.b16 %v132
    %v1014 = vunpack.c.h.b16 %v132
    %v1015 = vunpack.c.l.b16 %v133
    %v1016 = vunpack.c.h.b16 %v133
    %v1017 = vunpack.c.l.b16 %v134
    %v1018 = vunpack.c.h.b16 %v134
    %v1019 = vunpack.c.l.b16 %v135
    %v1020 = vunpack.c.h.b16 %v135
    %v1021 = vunpack.c.l.b16 %v136
    %v1022 = vunpack.c.h.b16 %v136
    %v1023 = vunpack.c.l.b16 %v137
    %v1024 = vunpack.c.h.b16 %v137
    %v1025 = vunpack.c.l.b16 %v138
    %v1026 = vunpack.c.h.b16 %v138
    %v1027 = vunpack.c.l.b16 %v139
    %v1028 = vunpack.c.h.b16 %v139
    %v1029 = vunpack.c.l.b16 %v140
    %v1030 = vunpack.c.h.b16 %v140
    %v1031 = vunpack.c.l.b16 %v141
    %v1032 = vunpack.c.h.b16 %v141
    %v1033 = vunpack.c.l.b16 %v142
    %v1034 = vunpack.c.h.b16 %v142
    %v1035 = vunpack.c.l.b16 %v143
    %v1036 = vunpack.c.h.b16 %v143
    %v1037 = vunpack.c.l.b16 %v144
    %v1038 = vunpack.c.h.b16 %v144
    %v1039 = vunpack.c.l.b16 %v145
    %v1040 = vunpack.c.h.b16 %v145
    %v1041 = vunpack.c.l.b16 %v146
    %v1042 = vunpack.c.h.b16 %v146
    %v1043 = vunpack.c.l.b16 %v147
    %v1044 = vunpack.c.h.b16 %v147
    %v1045 = vunpack.c.l.b16 %v148
    %v1046 = vunpack.c.h.b16 %v148
    %v1047 = vunpack.c.l.b16 %v149
    %v1048 = vunpack.c.h.b16 %v149
    %v1049 = vunpack.c.l.b16 %v150
    %v1050 = vunpack.c.h.b16 %v150
    %v1051 = vunpack.c.l.b16 %v151
    %v1052 = vunpack.c.h.b16 %v151
    %v1053 = vunpack.c.l.b16 %v152
    %v1054 = vunpack.c.h.b16 %v152
    %v1055 = vunpack.c.l.b16 %v153
    %v1056 = vunpack.c.h.b16 %v153
    %v1057 = vunpack.c.l.b16 %v154
    %v1058 = vunpack.c.h.b16 %v154
    %v1059 = vunpack.c.l.b16 %v155
    %v1060 = vunpack.c.h.b16 %v155
    %v1061 = vunpack.c.l.b16 %v156
    %v1062 = vunpack.c.h.b16 %v156
    %v1063 = vunpack.c.l.b16 %v157
    %v1064 = vunpack.c.h.b16 %v157
    %v1065 = vunpack.c.l.b16 %v158
    %v1066 = vunpack.c.h.b16 %v158
    %v1067 = vunpack.c.l.b16 %v159
    %v1068 = vunpack.c.h.b16 %v159
    %v1069 = vunpack.c.l.b16 %v160
    %v1070 = vunpack.c.h.b16 %v160
    %v1071 = vunpack.c.l.b16 %v161
    %v1072 = vunpack.c.h.b16 %v161
    %v1073 = vunpack.c.l.b16 %v162
    %v1074 = vunpack.c.h.b16 %v162
    %v1075 = vunpack.c.l.b16 %v163
    %v1076 = vunpack.c.h.b16 %v163
    %v1077 = vunpack.c.l.b16 %v164
    %v1078 = vunpack.c.h.b16 %v164
    %v1079 = vunpack.c.l.b16 %v165
    %v1080 = vunpack.c.h.b16 %v165
    %v1081 = vunpack.c.l.b16 %v166
    %v1082 = vunpack.c.h.b16 %v166
    %v1083 = vunpack.c.l.b16 %v167
    %v1084 = vunpack.c.h.b16 %v167
    %v1085 = vunpack.c.l.b16 %v168
    %v1086 = vunpack.c.h.b16 %v168
    %v1087 = vunpack.c.l.b16 %v169
    %v1088 = vunpack.c.h.b16 %v169
    %v1089 = vunpack.c.l.b16 %v170
    %v1090 = vunpack.c.h.b16 %v170
    %v1091 = vunpack.c.l.b16 %v171
    %v1092 = vunpack.c.h.b16 %v171
    %v1093 = vunpack.c.l.b16 %v172
    %v1094 = vunpack.c.h.b16 %v172
    %v1095 = vunpack.c.l.b16 %v173
    %v1096 = vunpack.c.h.b16 %v173
    %v1097 = vunpack.c.l.b16 %v174
    %v1098 = vunpack.c.h.b16 %v174
    %v1099 = vunpack.c.l.b16 %v175
    %v1100 = vunpack.c.h.b16 %v175
    %v1101 = vunpack.c.l.b16 %v176
    %v1102 = vunpack.c.h.b16 %v176
    %v1103 = vunpack.c.l.b16 %v177
    %v1104 = vunpack.c.h.b16 %v177
    %v1105 = vunpack.c.l.b16 %v178
    %v1106 = vunpack.c.h.b16 %v178
    %v1107 = vunpack.c.l.b16 %v179
    %v1108 = vunpack.c.h.b16 %v179
    %v1109 = vunpack.c.l.b16 %v180
    %v1110 = vunpack.c.h.b16 %v180
    %v1111 = vunpack.c.l.b16 %v181
    %v1112 = vunpack.c.h.b16 %v181
    %v1113 = vunpack.c.l.b16 %v182
    %v1114 = vunpack.c.h.b16 %v182
    %v1115 = vunpack.c.l.b16 %v183
    %v1116 = vunpack.c.h.b16 %v183
    %v1117 = vunpack.c.l.b16 %v184
    %v1118 = vunpack.c.h.b16 %v184
    %v1119 = vunpack.c.l.b16 %v185
    %v1120 = vunpack.c.h.b16 %v185
    %v1121 = vunpack.c.l.b16 %v186
    %v1122 = vunpack.c.h.b16 %v186
    %v1123 = vunpack.c.l.b16 %v187
    %v1124 = vunpack.c.h.b16 %v187
    %v1125 = vunpack.c.l.b16 %v188
    %v1126 = vunpack.c.h.b16 %v188
    %v1127 = vunpack.c.l.b16 %v189
    %v1128 = vunpack.c.h.b16 %v189
    %v1129 = vunpack.c.l.b16 %v190
    %v1130 = vunpack.c.h.b16 %v190
    %v1131 = vunpack.c.l.b16 %v191
    %v1132 = vunpack.c.h.b16 %v191
    %v1133 = vunpack.c.l.b16 %v192
    %v1134 = vunpack.c.h.b16 %v192
    %v1135 = vunpack.c.l.b16 %v193
    %v1136 = vunpack.c.h.b16 %v193
    %v1137 = vunpack.c.l.b16 %v194
    %v1138 = vunpack.c.h.b16 %v194
    %v1139 = vunpack.c.l.b16 %v195
    %v1140 = vunpack.c.h.b16 %v195
    %v1141 = vunpack.c.l.b16 %v196
    %v1142 = vunpack.c.h.b16 %v196
    %v1143 = vunpack.c.l.b16 %v197
    %v1144 = vunpack.c.h.b16 %v197
    %v1145 = vunpack.c.l.b16 %v198
    %v1146 = vunpack.c.h.b16 %v198
    %v1147 = vunpack.c.l.b16 %v199
    %v1148 = vunpack.c.h.b16 %v199
    %v1149 = vunpack.c.l.b16 %v200
    %v1150 = vunpack.c.h.b16 %v200
    %v1151 = vunpack.c.l.b16 %v201
    %v1152 = vunpack.c.h.b16 %v201
    %v1153 = vunpack.c.l.b16 %v202
    %v1154 = vunpack.c.h.b16 %v202
    %v1155 = vunpack.c.l.b16 %v203
    %v1156 = vunpack.c.h.b16 %v203
    %v1157 = vunpack.c.l.b16 %v204
    %v1158 = vunpack.c.h.b16 %v204
    %v1159 = vunpack.c.l.b16 %v205
    %v1160 = vunpack.c.h.b16 %v205
    %v1161 = vunpack.c.l.b16 %v206
    %v1162 = vunpack.c.h.b16 %v206
    %v1163 = vunpack.c.l.b16 %v207
    %v1164 = vunpack.c.h.b16 %v207
    %v1165 = vunpack.c.l.b16 %v208
    %v1166 = vunpack.c.h.b16 %v208
    %v1167 = vunpack.c.l.b16 %v209
    %v1168 = vunpack.c.h.b16 %v209
    %v1169 = vunpack.c.l.b16 %v210
    %v1170 = vunpack.c.h.b16 %v210
    %v1171 = vunpack.c.l.b16 %v211
    %v1172 = vunpack.c.h.b16 %v211
    %v1173 = vunpack.c.l.b16 %v212
    %v1174 = vunpack.c.h.b16 %v212
    %v1175 = vunpack.c.l.b16 %v213
    %v1176 = vunpack.c.h.b16 %v213
    %v1177 = vunpack.c.l.b16 %v214
    %v1178 = vunpack.c.h.b16 %v214
    %v1179 = vunpack.c.l.b16 %v215
    %v1180 = vunpack.c.h.b16 %v215
    %v1181 = vunpack.c.l.b16 %v216
    %v1182 = vunpack.c.h.b16 %v216
    %v1183 = vunpack.c.l.b16 %v217
    %v1184 = vunpack.c.h.b16 %v217
    %v1185 = vunpack.c.l.b16 %v218
    %v1186 = vunpack.c.h.b16 %v218
    %v1187 = vunpack.c.l.b16 %v219
    %v1188 = vunpack.c.h.b16 %v219
    %v1189 = vunpack.c.l.b16 %v220
    %v1190 = vunpack.c.h.b16 %v220
    %v1191 = vunpack.c.l.b16 %v221
    %v1192 = vunpack.c.h.b16 %v221
    %v1193 = vunpack.c.l.b16 %v222
    %v1194 = vunpack.c.h.b16 %v222
    %v1195 = vunpack.c.l.b16 %v223
    %v1196 = vunpack.c.h.b16 %v223
    %v1197 = vunpack.c.l.b16 %v224
    %v1198 = vunpack.c.h.b16 %v224
    %v1199 = vunpack.c.l.b16 %v225
    %v1200 = vunpack.c.h.b16 %v225
    %v1201 = vunpack.c.l.b16 %v226
    %v1202 = vunpack.c.h.b16 %v226
    %v1203 = vunpack.c.l.b16 %v227
    %v1204 = vunpack.c.h.b16 %v227
    %v1205 = vunpack.c.l.b16 %v228
    %v1206 = vunpack.c.h.b16 %v228
    %v1207 = vunpack.c.l.b16 %v229
    %v1208 = vunpack.c.h.b16 %v229
    %v1209 = vunpack.c.l.b16 %v230
    %v1210 = vunpack.c.h.b16 %v230
    %v1211 = vunpack.c.l.b16 %v231
    %v1212 = vunpack.c.h.b16 %v231
    %v1213 = vunpack.c.l.b16 %v232
    %v1214 = vunpack.c.h.b16 %v232
    %v1215 = vunpack.c.l.b16 %v233
    %v1216 = vunpack.c.h.b16 %v233
    %v1217 = vunpack.c.l.b16 %v234
    %v1218 = vunpack.c.h.b16 %v234
    %v1219 = vunpack.c.l.b16 %v235
    %v1220 = vunpack.c.h.b16 %v235
    %v1221 = vunpack.c.l.b16 %v236
    %v1222 = vunpack.c.h.b16 %v236
    %v1223 = vunpack.c.l.b16 %v237
    %v1224 = vunpack.c.h.b16 %v237
    %v1225 = vunpack.c.l.b16 %v238
    %v1226 = vunpack.c.h.b16 %v238
    %v1227 = vunpack.c.l.b16 %v239
    %v1228 = vunpack.c.h.b16 %v239
    %v1229 = vunpack.c.l.b16 %v240
    %v1230 = vunpack.c.h.b16 %v240
    %v1231 = vunpack.c.l.b16 %v241
    %v1232 = vunpack.c.h.b16 %v241
    %v1233 = vunpack.c.l.b16 %v242
    %v1234 = vunpack.c.h.b16 %v242
    %v1235 = vunpack.c.l.b16 %v243
    %v1236 = vunpack.c.h.b16 %v243
    %v1237 = vunpack.c.l.b16 %v244
    %v1238 = vunpack.c.h.b16 %v244
    %v1239 = vunpack.c.l.b16 %v245
    %v1240 = vunpack.c.h.b16 %v245
    %v1241 = vunpack.c.l.b16 %v246
    %v1242 = vunpack.c.h.b16 %v246
    %v1243 = vunpack.c.l.b16 %v247
    %v1244 = vunpack.c.h.b16 %v247
    %v1245 = vunpack.c.l.b16 %v248
    %v1246 = vunpack.c.h.b16 %v248
    %v1247 = vunpack.c.l.b16 %v249
    %v1248 = vunpack.c.h.b16 %v249
    %v1249 = vunpack.c.l.b16 %v250
    %v1250 = vunpack.c.h.b16 %v250
    %v1251 = vunpack.c.l.b16 %v251
    %v1252 = vunpack.c.h.b16 %v251
    %v1253 = vunpack.c.l.b16 %v252
    %v1254 = vunpack.c.h.b16 %v252
    %v1255 = vunpack.c.l.b16 %v253
    %v1256 = vunpack.c.h.b16 %v253
    %v1257 = vunpack.c.l.b16 %v254
    %v1258 = vunpack.c.h.b16 %v254
    %v1259 = vunpack.c.l.b16 %v255
    %v1260 = vunpack.c.h.b16 %v255
    %v1261 = vunpack.c.l.b16 %v256
    %v1262 = vunpack.c.h.b16 %v256
    %v1263 = vunpack.c.l.b16 %v257
    %v1264 = vunpack.c.h.b16 %v257
    %v1265 = vunpack.c.l.b16 %v258
    %v1266 = vunpack.c.h.b16 %v258
    %v1267 = vunpack.c.l.b16 %v259
    %v1268 = vunpack.c.h.b16 %v259
    %v1269 = vunpack.c.l.b16 %v260
    %v1270 = vunpack.c.h.b16 %v260
    %v1271 = vunpack.c.l.b16 %v261
    %v1272 = vunpack.c.h.b16 %v261
    %v1273 = vunpack.c.l.b16 %v262
    %v1274 = vunpack.c.h.b16 %v262
    %v1275 = vunpack.c.l.b16 %v263
    %v1276 = vunpack.c.h.b16 %v263
    %v1277 = vunpack.c.l.b16 %v264
    %v1278 = vunpack.c.h.b16 %v264
    %v1279 = vunpack.c.l.b16 %v265
    %v1280 = vunpack.c.h.b16 %v265
    %v1281 = vunpack.c.l.b16 %v266
    %v1282 = vunpack.c.h.b16 %v266
    %v1283 = vunpack.c.l.b16 %v267
    %v1284 = vunpack.c.h.b16 %v267
    %v1285 = vunpack.c.l.b16 %v268
    %v1286 = vunpack.c.h.b16 %v268
    %v1287 = vunpack.c.l.b16 %v269
    %v1288 = vunpack.c.h.b16 %v269
    %v1289 = vunpack.c.l.b16 %v270
    %v1290 = vunpack.c.h.b16 %v270
    %v1291 = vunpack.c.l.b16 %v271
    %v1292 = vunpack.c.h.b16 %v271
    %v1293 = vunpack.c.l.b16 %v272
    %v1294 = vunpack.c.h.b16 %v272
    %v1295 = vunpack.c.l.b16 %v273
    %v1296 = vunpack.c.h.b16 %v273
    %v1297 = vunpack.c.l.b16 %v274
    %v1298 = vunpack.c.h.b16 %v274
    %v1299 = vunpack.c.l.b16 %v275
    %v1300 = vunpack.c.h.b16 %v275
    %v1301 = vunpack.c.l.b16 %v276
    %v1302 = vunpack.c.h.b16 %v276
    %v1303 = vunpack.c.l.b16 %v277
    %v1304 = vunpack.c.h.b16 %v277
    %v1305 = vunpack.c.l.b16 %v278
    %v1306 = vunpack.c.h.b16 %v278
    %v1307 = vunpack.c.l.b16 %v279
    %v1308 = vunpack.c.h.b16 %v279
    %v1309 = vunpack.c.l.b16 %v280
    %v1310 = vunpack.c.h.b16 %v280
    %v1311 = vunpack.c.l.b16 %v281
    %v1312 = vunpack.c.h.b16 %v281
    %v1313 = vunpack.c.l.b16 %v282
    %v1314 = vunpack.c.h.b16 %v282
    %v1315 = vunpack.c.l.b16 %v283
    %v1316 = vunpack.c.h.b16 %v283
    %v1317 = vunpack.c.l.b16 %v284
    %v1318 = vunpack.c.h.b16 %v284
    %v1319 = vunpack.c.l.b16 %v285
    %v1320 = vunpack.c.h.b16 %v285
    %v1321 = vunpack.c.l.b16 %v286
    %v1322 = vunpack.c.h.b16 %v286
    %v1323 = vunpack.c.l.b16 %v287
    %v1324 = vunpack.c.h.b16 %v287
    %v1325 = vunpack.c.l.b16 %v288
    %v1326 = vunpack.c.h.b16 %v288
    %v1327 = vunpack.c.l.b16 %v289
    %v1328 = vunpack.c.h.b16 %v289
    %v1329 = vunpack.c.l.b16 %v290
    %v1330 = vunpack.c.h.b16 %v290
    %v1331 = vunpack.c.l.b16 %v291
    %v1332 = vunpack.c.h.b16 %v291
    %v1333 = vunpack.c.l.b16 %v292
    %v1334 = vunpack.c.h.b16 %v292
    %v1335 = vunpack.c.l.b16 %v293
    %v1336 = vunpack.c.h.b16 %v293
    %v1337 = vunpack.c.l.b16 %v294
    %v1338 = vunpack.c.h.b16 %v294
    %v1339 = vunpack.c.l.b16 %v295
    %v1340 = vunpack.c.h.b16 %v295
    %v1341 = vunpack.c.l.b16 %v296
    %v1342 = vunpack.c.h.b16 %v296
    %v1343 = vunpack.c.l.b16 %v297
    %v1344 = vunpack.c.h.b16 %v297
    %v1345 = vunpack.c.l.b16 %v298
    %v1346 = vunpack.c.h.b16 %v298
    %v1347 = vunpack.c.l.b16 %v299
    %v1348 = vunpack.c.h.b16 %v299
    %v1349 = vunpack.c.l.b16 %v300
    %v1350 = vunpack.c.h.b16 %v300
    %v1351 = vunpack.c.l.b16 %v301
    %v1352 = vunpack.c.h.b16 %v301
    %v1353 = vunpack.c.l.b16 %v302
    %v1354 = vunpack.c.h.b16 %v302
    %v1355 = vunpack.c.l.b16 %v303
    %v1356 = vunpack.c.h.b16 %v303
    %v1357 = vunpack.c.l.b16 %v304
    %v1358 = vunpack.c.h.b16 %v304
    %v1359 = vunpack.c.l.b16 %v305
    %v1360 = vunpack.c.h.b16 %v305
    %v1361 = vunpack.c.l.b16 %v306
    %v1362 = vunpack.c.h.b16 %v306
    %v1363 = vunpack.c.l.b16 %v307
    %v1364 = vunpack.c.h.b16 %v307
    %v1365 = vunpack.c.l.b16 %v308
    %v1366 = vunpack.c.h.b16 %v308
    %v1367 = vunpack.c.l.b16 %v309
    %v1368 = vunpack.c.h.b16 %v309
    %v1369 = vunpack.c.l.b16 %v310
    %v1370 = vunpack.c.h.b16 %v310
    %v1371 = vunpack.c.l.b16 %v311
    %v1372 = vunpack.c.h.b16 %v311
    %v1373 = vunpack.c.l.b16 %v312
    %v1374 = vunpack.c.h.b16 %v312
    %v1375 = vunpack.c.l.b16 %v313
    %v1376 = vunpack.c.h.b16 %v313
    %v1377 = vunpack.c.l.b16 %v314
    %v1378 = vunpack.c.h.b16 %v314
    %v1379 = vunpack.c.l.b16 %v315
    %v1380 = vunpack.c.h.b16 %v315
    %v1381 = vunpack.c.l.b16 %v316
    %v1382 = vunpack.c.h.b16 %v316
    %v1383 = vunpack.c.l.b16 %v317
    %v1384 = vunpack.c.h.b16 %v317
    %v1385 = vunpack.c.l.b16 %v318
    %v1386 = vunpack.c.h.b16 %v318
    %v1387 = vunpack.c.l.b16 %v319
    %v1388 = vunpack.c.h.b16 %v319
    %v1389 = vunpack.c.l.b16 %v320
    %v1390 = vunpack.c.h.b16 %v320
    %v1391 = vunpack.c.l.b16 %v321
    %v1392 = vunpack.c.h.b16 %v321
    %v1393 = vunpack.c.l.b16 %v322
    %v1394 = vunpack.c.h.b16 %v322
    %v1395 = vunpack.c.l.b16 %v323
    %v1396 = vunpack.c.h.b16 %v323
    %v1397 = vunpack.c.l.b16 %v324
    %v1398 = vunpack.c.h.b16 %v324
    %v1399 = vunpack.c.l.b16 %v325
    %v1400 = vunpack.c.h.b16 %v325
    %v1401 = vunpack.c.l.b16 %v326
    %v1402 = vunpack.c.h.b16 %v326
    %v1403 = vunpack.c.l.b16 %v327
    %v1404 = vunpack.c.h.b16 %v327
    %v1405 = vunpack.c.l.b16 %v328
    %v1406 = vunpack.c.h.b16 %v328
    %v1407 = vunpack.c.l.b16 %v329
    %v1408 = vunpack.c.h.b16 %v329
    %v1409 = vunpack.c.l.b16 %v330
    %v1410 = vunpack.c.h.b16 %v330
    %v1411 = vunpack.c.l.b16 %v331
    %v1412 = vunpack.c.h.b16 %v331
    %v1413 = vunpack.c.l.b16 %v332
    %v1414 = vunpack.c.h.b16 %v332
    %v1415 = vunpack.c.l.b16 %v333
    %v1416 = vunpack.c.h.b16 %v333
    %v1417 = vunpack.c.l.b16 %v334
    %v1418 = vunpack.c.h.b16 %v334
    %v1419 = vunpack.c.l.b16 %v335
    %v1420 = vunpack.c.h.b16 %v335
    %v1421 = vunpack.c.l.b16 %v336
    %v1422 = vunpack.c.h.b16 %v336
    %v1423 = vunpack.c.l.b16 %v337
    %v1424 = vunpack.c.h.b16 %v337
    %v1425 = vunpack.c.l.b16 %v338
    %v1426 = vunpack.c.h.b16 %v338
    %v1427 = vunpack.c.l.b16 %v339
    %v1428 = vunpack.c.h.b16 %v339
    %v1429 = vunpack.c.l.b16 %v340
    %v1430 = vunpack.c.h.b16 %v340
    %v1431 = vunpack.c.l.b16 %v341
    %v1432 = vunpack.c.h.b16 %v341
    %v1433 = vunpack.c.l.b16 %v342
    %v1434 = vunpack.c.h.b16 %v342
    %v1435 = vunpack.c.l.b16 %v343
    %v1436 = vunpack.c.h.b16 %v343
    %v1437 = vunpack.c.l.b16 %v344
    %v1438 = vunpack.c.h.b16 %v344
    %v1439 = vunpack.c.l.b16 %v345
    %v1440 = vunpack.c.h.b16 %v345
    %v1441 = vunpack.c.l.b16 %v346
    %v1442 = vunpack.c.h.b16 %v346
    %v1443 = vunpack.c.l.b16 %v347
    %v1444 = vunpack.c.h.b16 %v347
    %v1445 = vunpack.c.l.b16 %v348
    %v1446 = vunpack.c.h.b16 %v348
    %v1447 = vunpack.c.l.b16 %v349
    %v1448 = vunpack.c.h.b16 %v349
    %v1449 = vunpack.c.l.b16 %v350
    %v1450 = vunpack.c.h.b16 %v350
    %v1451 = vunpack.c.l.b16 %v351
    %v1452 = vunpack.c.h.b16 %v351
    %v1453 = vunpack.c.l.b16 %v352
    %v1454 = vunpack.c.h.b16 %v352
    %v1455 = vunpack.c.l.b16 %v353
    %v1456 = vunpack.c.h.b16 %v353
    %v1457 = vunpack.c.l.b16 %v354
    %v1458 = vunpack.c.h.b16 %v354
    %v1459 = vunpack.c.l.b16 %v355
    %v1460 = vunpack.c.h.b16 %v355
    %v1461 = vunpack.c.l.b16 %v356
    %v1462 = vunpack.c.h.b16 %v356
    %v1463 = vunpack.c.l.b16 %v357
    %v1464 = vunpack.c.h.b16 %v357
    %v1465 = vunpack.c.l.b16 %v358
    %v1466 = vunpack.c.h.b16 %v358
    %v1467 = vunpack.c.l.b16 %v359
    %v1468 = vunpack.c.h.b16 %v359
    %v1469 = vunpack.c.l.b16 %v360
    %v1470 = vunpack.c.h.b16 %v360
    %v1471 = vunpack.c.l.b16 %v361
    %v1472 = vunpack.c.h.b16 %v361
    %v1473 = vunpack.c.l.b16 %v362
    %v1474 = vunpack.c.h.b16 %v362
    %v1475 = vunpack.c.l.b16 %v363
    %v1476 = vunpack.c.h.b16 %v363
    %v1477 = vunpack.c.l.b16 %v364
    %v1478 = vunpack.c.h.b16 %v364
    %v1479 = vunpack.c.l.b16 %v365
    %v1480 = vunpack.c.h.b16 %v365
    %v1481 = vunpack.c.l.b16 %v366
    %v1482 = vunpack.c.h.b16 %v366
    %v1483 = vunpack.c.l.b16 %v367
    %v1484 = vunpack.c.h.b16 %v367
    %v1485 = vunpack.c.l.b16 %v368
    %v1486 = vunpack.c.h.b16 %v368
    %v1487 = vunpack.c.l.b16 %v369
    %v1488 = vunpack.c.h.b16 %v369
    %v1489 = vunpack.c.l.b16 %v370
    %v1490 = vunpack.c.h.b16 %v370
    %v1491 = vunpack.c.l.b16 %v371
    %v1492 = vunpack.c.h.b16 %v371
    %v1493 = vunpack.c.l.b16 %v372
    %v1494 = vunpack.c.h.b16 %v372
    %v1495 = vunpack.c.l.b16 %v373
    %v1496 = vunpack.c.h.b16 %v373
    %v1497 = vunpack.c.l.b16 %v374
    %v1498 = vunpack.c.h.b16 %v374
    %v1499 = vunpack.c.l.b16 %v375
    %v1500 = vunpack.c.h.b16 %v375
    %v1501 = vunpack.c.l.b16 %v376
    %v1502 = vunpack.c.h.b16 %v376
    %v1503 = vunpack.c.l.b16 %v377
    %v1504 = vunpack.c.h.b16 %v377
    %v1505 = vunpack.c.l.b16 %v378
    %v1506 = vunpack.c.h.b16 %v378
    %v1507 = vunpack.c.l.b16 %v379
    %v1508 = vunpack.c.h.b16 %v379
    %v1509 = vunpack.c.l.b16 %v380
    %v1510 = vunpack.c.h.b16 %v380
    %v1511 = vunpack.c.l.b16 %v381
    %v1512 = vunpack.c.h.b16 %v381
    %v1513 = vunpack.c.l.b16 %v382
    %v1514 = vunpack.c.h.b16 %v382
    %v1515 = vunpack.c.l.b16 %v383
    %v1516 = vunpack.c.h.b16 %v383
    %v1517 = vunpack.c.l.b16 %v384
    %v1518 = vunpack.c.h.b16 %v384
    %v1519 = vunpack.c.l.b16 %v385
    %v1520 = vunpack.c.h.b16 %v385
    %v1521 = vunpack.c.l.b16 %v386
    %v1522 = vunpack.c.h.b16 %v386
    %v1523 = vunpack.c.l.b16 %v387
    %v1524 = vunpack.c.h.b16 %v387
    %v1525 = vunpack.c.l.b16 %v388
    %v1526 = vunpack.c.h.b16 %v388
    %v1527 = vunpack.c.l.b16 %v389
    %v1528 = vunpack.c.h.b16 %v389
    %v1529 = vunpack.c.l.b16 %v390
    %v1530 = vunpack.c.h.b16 %v390
    %v1531 = vunpack.c.l.b16 %v391
    %v1532 = vunpack.c.h.b16 %v391
    %v1533 = vunpack.c.l.b16 %v392
    %v1534 = vunpack.c.h.b16 %v392
    %v1535 = vunpack.c.l.b16 %v393
    %v1536 = vunpack.c.h.b16 %v393
    %v1537 = vunpack.c.l.b16 %v394
    %v1538 = vunpack.c.h.b16 %v394
    %v1539 = vunpack.c.l.b16 %v395
    %v1540 = vunpack.c.h.b16 %v395
    %v1541 = vunpack.c.l.b16 %v396
    %v1542 = vunpack.c.h.b16 %v396
    %v1543 = vunpack.c.l.b16 %v397
    %v1544 = vunpack.c.h.b16 %v397
    %v1545 = vunpack.c.l.b16 %v398
    %v1546 = vunpack.c.h.b16 %v398
    %v1547 = vunpack.c.l.b16 %v399
    %v1548 = vunpack.c.h.b16 %v399
    %v1549 = vunpack.c.l.b16 %v400
    %v1550 = vunpack.c.h.b16 %v400
    %v1551 = vunpack.c.l.b16 %v401
    %v1552 = vunpack.c.h.b16 %v401
    %v1553 = vunpack.c.l.b16 %v402
    %v1554 = vunpack.c.h.b16 %v402
    %v1555 = vunpack.c.l.b16 %v403
    %v1556 = vunpack.c.h.b16 %v403
    %v1557 = vunpack.c.l.b16 %v404
    %v1558 = vunpack.c.h.b16 %v404
    %v1559 = vunpack.c.l.b16 %v405
    %v1560 = vunpack.c.h.b16 %v405
    %v1561 = vunpack.c.l.b16 %v406
    %v1562 = vunpack.c.h.b16 %v406
    %v1563 = vunpack.c.l.b16 %v407
    %v1564 = vunpack.c.h.b16 %v407
    %v1565 = vunpack.c.l.b16 %v408
    %v1566 = vunpack.c.h.b16 %v408
    %v1567 = vunpack.c.l.b16 %v409
    %v1568 = vunpack.c.h.b16 %v409
    %v1569 = vunpack.c.l.b16 %v410
    %v1570 = vunpack.c.h.b16 %v410
    %v1571 = vunpack.c.l.b16 %v411
    %v1572 = vunpack.c.h.b16 %v411
    %v1573 = vunpack.c.l.b16 %v412
    %v1574 = vunpack.c.h.b16 %v412
    %v1575 = vunpack.c.l.b16 %v413
    %v1576 = vunpack.c.h.b16 %v413
    %v1577 = vunpack.c.l.b16 %v414
    %v1578 = vunpack.c.h.b16 %v414
    %v1579 = vunpack.c.l.b16 %v415
    %v1580 = vunpack.c.h.b16 %v415
    %v1581 = vunpack.c.l.b16 %v416
    %v1582 = vunpack.c.h.b16 %v416
    %v1583 = vunpack.c.l.b16 %v417
    %v1584 = vunpack.c.h.b16 %v417
    %v1585 = vunpack.c.l.b16 %v418
    %v1586 = vunpack.c.h.b16 %v418
    %v1587 = vunpack.c.l.b16 %v419
    %v1588 = vunpack.c.h.b16 %v419
    %v1589 = vunpack.c.l.b16 %v420
    %v1590 = vunpack.c.h.b16 %v420
    %v1591 = vunpack.c.l.b16 %v421
    %v1592 = vunpack.c.h.b16 %v421
    %v1593 = vunpack.c.l.b16 %v422
    %v1594 = vunpack.c.h.b16 %v422
    %v1595 = vunpack.c.l.b16 %v423
    %v1596 = vunpack.c.h.b16 %v423
    %v1597 = vunpack.c.l.b16 %v424
    %v1598 = vunpack.c.h.b16 %v424
    %v1599 = vunpack.c.l.b16 %v425
    %v1600 = vunpack.c.h.b16 %v425
    %v1601 = vunpack.c.l.b16 %v426
    %v1602 = vunpack.c.h.b16 %v426
    %v1603 = vunpack.c.l.b16 %v427
    %v1604 = vunpack.c.h.b16 %v427
    %v1605 = vunpack.c.l.b16 %v428
    %v1606 = vunpack.c.h.b16 %v428
    %v1607 = vunpack.c.l.b16 %v429
    %v1608 = vunpack.c.h.b16 %v429
    %v1609 = vunpack.c.l.b16 %v430
    %v1610 = vunpack.c.h.b16 %v430
    %v1611 = vunpack.c.l.b16 %v431
    %v1612 = vunpack.c.h.b16 %v431
    %v1613 = vunpack.c.l.b16 %v432
    %v1614 = vunpack.c.h.b16 %v432
    %v1615 = vunpack.c.l.b16 %v433
    %v1616 = vunpack.c.h.b16 %v433
    %v1617 = vunpack.c.l.b16 %v434
    %v1618 = vunpack.c.h.b16 %v434
    %v1619 = vunpack.c.l.b16 %v435
    %v1620 = vunpack.c.h.b16 %v435
    %v1621 = vunpack.c.l.b16 %v436
    %v1622 = vunpack.c.h.b16 %v436
    %v1623 = vunpack.c.l.b16 %v437
    %v1624 = vunpack.c.h.b16 %v437
    %v1625 = vunpack.c.l.b16 %v438
    %v1626 = vunpack.c.h.b16 %v438
    %v1627 = vunpack.c.l.b16 %v439
    %v1628 = vunpack.c.h.b16 %v439
    %v1629 = vunpack.c.l.b16 %v440
    %v1630 = vunpack.c.h.b16 %v440
    %v1631 = vunpack.c.l.b16 %v441
    %v1632 = vunpack.c.h.b16 %v441
    %v1633 = vunpack.c.l.b16 %v442
    %v1634 = vunpack.c.h.b16 %v442
    %v1635 = vunpack.c.l.b16 %v443
    %v1636 = vunpack.c.h.b16 %v443
    %v1637 = vunpack.c.l.b16 %v444
    %v1638 = vunpack.c.h.b16 %v444
    %v1639 = vunpack.c.l.b16 %v445
    %v1640 = vunpack.c.h.b16 %v445
    %v1641 = vunpack.c.l.b16 %v446
    %v1642 = vunpack.c.h.b16 %v446
    %v1643 = vunpack.c.l.b16 %v447
    %v1644 = vunpack.c.h.b16 %v447
    %v1645 = vunpack.c.l.b16 %v448
    %v1646 = vunpack.c.h.b16 %v448
    %v1647 = vunpack.c.l.b16 %v449
    %v1648 = vunpack.c.h.b16 %v449
    %v1649 = vunpack.c.l.b16 %v450
    %v1650 = vunpack.c.h.b16 %v450
    %v1651 = vunpack.c.l.b16 %v451
    %v1652 = vunpack.c.h.b16 %v451
    %v1653 = vunpack.c.l.b16 %v452
    %v1654 = vunpack.c.h.b16 %v452
    %v1655 = vunpack.c.l.b16 %v453
    %v1656 = vunpack.c.h.b16 %v453
    %v1657 = vunpack.c.l.b16 %v454
    %v1658 = vunpack.c.h.b16 %v454
    %v1659 = vunpack.c.l.b16 %v455
    %v1660 = vunpack.c.h.b16 %v455
    %v1661 = vunpack.c.l.b16 %v456
    %v1662 = vunpack.c.h.b16 %v456
    %v1663 = vunpack.c.l.b16 %v457
    %v1664 = vunpack.c.h.b16 %v457
    %v1665 = vunpack.c.l.b16 %v458
    %v1666 = vunpack.c.h.b16 %v458
    %v1667 = vunpack.c.l.b16 %v459
    %v1668 = vunpack.c.h.b16 %v459
    %v1669 = vunpack.c.l.b16 %v460
    %v1670 = vunpack.c.h.b16 %v460
    %v1671 = vunpack.c.l.b16 %v461
    %v1672 = vunpack.c.h.b16 %v461
    %v1673 = vunpack.c.l.b16 %v462
    %v1674 = vunpack.c.h.b16 %v462
    %v1675 = vunpack.c.l.b16 %v463
    %v1676 = vunpack.c.h.b16 %v463
    %v1677 = vunpack.c.l.b16 %v464
    %v1678 = vunpack.c.h.b16 %v464
    %v1679 = vunpack.c.l.b16 %v465
    %v1680 = vunpack.c.h.b16 %v465
    %v1681 = vunpack.c.l.b16 %v466
    %v1682 = vunpack.c.h.b16 %v466
    %v1683 = vunpack.c.l.b16 %v467
    %v1684 = vunpack.c.h.b16 %v467
    %v1685 = vunpack.c.l.b16 %v468
    %v1686 = vunpack.c.h.b16 %v468
    %v1687 = vunpack.c.l.b16 %v469
    %v1688 = vunpack.c.h.b16 %v469
    %v1689 = vunpack.c.l.b16 %v470
    %v1690 = vunpack.c.h.b16 %v470
    %v1691 = vunpack.c.l.b16 %v471
    %v1692 = vunpack.c.h.b16 %v471
    %v1693 = vunpack.c.l.b16 %v472
    %v1694 = vunpack.c.h.b16 %v472
    %v1695 = vunpack.c.l.b16 %v473
    %v1696 = vunpack.c.h.b16 %v473
    %v1697 = vunpack.c.l.b16 %v474
    %v1698 = vunpack.c.h.b16 %v474
    %v1699 = vunpack.c.l.b16 %v475
    %v1700 = vunpack.c.h.b16 %v475
    %v1701 = vunpack.c.l.b16 %v476
    %v1702 = vunpack.c.h.b16 %v476
    %v1703 = vunpack.c.l.b16 %v477
    %v1704 = vunpack.c.h.b16 %v477
    %v1705 = vunpack.c.l.b16 %v478
    %v1706 = vunpack.c.h.b16 %v478
    %v1707 = vunpack.c.l.b16 %v479
    %v1708 = vunpack.c.h.b16 %v479
    %v1709 = vunpack.c.l.b16 %v480
    %v1710 = vunpack.c.h.b16 %v480
    %v1711 = vunpack.c.l.b16 %v481
    %v1712 = vunpack.c.h.b16 %v481
    %v1713 = vunpack.c.l.b16 %v482
    %v1714 = vunpack.c.h.b16 %v482
    %v1715 = vunpack.c.l.b16 %v483
    %v1716 = vunpack.c.h.b16 %v483
    %v1717 = vunpack.c.l.b16 %v484
    %v1718 = vunpack.c.h.b16 %v484
    %v1719 = vunpack.c.l.b16 %v485
    %v1720 = vunpack.c.h.b16 %v485
    %v1721 = vunpack.c.l.b16 %v486
    %v1722 = vunpack.c.h.b16 %v486
    %v1723 = vunpack.c.l.b16 %v487
    %v1724 = vunpack.c.h.b16 %v487
    %v1725 = vunpack.c.l.b16 %v488
    %v1726 = vunpack.c.h.b16 %v488
    %v1727 = vunpack.c.l.b16 %v489
    %v1728 = vunpack.c.h.b16 %v489
    %v1729 = vunpack.c.l.b16 %v490
    %v1730 = vunpack.c.h.b16 %v490
    %v1731 = vunpack.c.l.b16 %v491
    %v1732 = vunpack.c.h.b16 %v491
    %v1733 = vunpack.c.l.b16 %v492
    %v1734 = vunpack.c.h.b16 %v492
    %v1735 = vunpack.c.l.b16 %v493
    %v1736 = vunpack.c.h.b16 %v493
    %v1737 = vunpack.c.l.b16 %v494
    %v1738 = vunpack.c.h.b16 %v494
    %v1739 = vunpack.c.l.b16 %v495
    %v1740 = vunpack.c.h.b16 %v495
    %v1741 = vunpack.c.l.b16 %v496
    %v1742 = vunpack.c.h.b16 %v496
    %v1743 = vunpack.c.l.b16 %v497
    %v1744 = vunpack.c.h.b16 %v497
    %v1745 = vunpack.c.l.b16 %v498
    %v1746 = vunpack.c.h.b16 %v498
    %v1747 = vpack.c.b16 %v981, %v979
    %v1748 = vpack.c.b16 %v982, %v980
    %v1749 = vpack.c.b16 %v985, %v983
    %v1750 = vpack.c.b16 %v986, %v984
    %v1751 = vpack.c.b16 %v989, %v987
    %v1752 = vpack.c.b16 %v990, %v988
    %v1753 = vpack.c.b16 %v993, %v991
    %v1754 = vpack.c.b16 %v994, %v992
    %v1755 = vpack.c.b16 %v997, %v995
    %v1756 = vpack.c.b16 %v998, %v996
    %v1757 = vpack.c.b16 %v1001, %v999
    %v1758 = vpack.c.b16 %v1002, %v1000
    %v1759 = vpack.c.b16 %v1005, %v1003
    %v1760 = vpack.c.b16 %v1006, %v1004
    %v1761 = vpack.c.b16 %v1009, %v1007
    %v1762 = vpack.c.b16 %v1010, %v1008
    %v1763 = vpack.c.b16 %v1013, %v1011
    %v1764 = vpack.c.b16 %v1014, %v1012
    %v1765 = vpack.c.b16 %v1017, %v1015
    %v1766 = vpack.c.b16 %v1018, %v1016
    %v1767 = vpack.c.b16 %v1021, %v1019
    %v1768 = vpack.c.b16 %v1022, %v1020
    %v1769 = vpack.c.b16 %v1025, %v1023
    %v1770 = vpack.c.b16 %v1026, %v1024
    %v1771 = vpack.c.b16 %v1029, %v1027
    %v1772 = vpack.c.b16 %v1030, %v1028
    %v1773 = vpack.c.b16 %v1033, %v1031
    %v1774 = vpack.c.b16 %v1034, %v1032
    %v1775 = vpack.c.b16 %v1037, %v1035
    %v1776 = vpack.c.b16 %v1038, %v1036
    %v1777 = vpack.c.b16 %v1041, %v1039
    %v1778 = vpack.c.b16 %v1042, %v1040
    %v1779 = vpack.c.b16 %v1045, %v1043
    %v1780 = vpack.c.b16 %v1046, %v1044
    %v1781 = vpack.c.b16 %v1049, %v1047
    %v1782 = vpack.c.b16 %v1050, %v1048
    %v1783 = vpack.c.b16 %v1053, %v1051
    %v1784 = vpack.c.b16 %v1054, %v1052
    %v1785 = vpack.c.b16 %v1057, %v1055
    %v1786 = vpack.c.b16 %v1058, %v1056
    %v1787 = vpack.c.b16 %v1061, %v1059
    %v1788 = vpack.c.b16 %v1062, %v1060
    %v1789 = vpack.c.b16 %v1065, %v1063
    %v1790 = vpack.c.b16 %v1066, %v1064
    %v1791 = vpack.c.b16 %v1069, %v1067
    %v1792 = vpack.c.b16 %v1070, %v1068
    %v1793 = vpack.c.b16 %v1073, %v1071
    %v1794 = vpack.c.b16 %v1074, %v1072
    %v1795 = vpack.c.b16 %v1077, %v1075
    %v1796 = vpack.c.b16 %v1078, %v1076
    %v1797 = vpack.c.b16 %v1081, %v1079
    %v1798 = vpack.c.b16 %v1082, %v1080
    %v1799 = vpack.c.b16 %v1085, %v1083
    %v1800 = vpack.c.b16 %v1086, %v1084
    %v1801 = vpack.c.b16 %v1089, %v1087
    %v1802 = vpack.c.b16 %v1090, %v1088
    %v1803 = vpack.c.b16 %v1093, %v1091
    %v1804 = vpack.c.b16 %v1094, %v1092
    %v1805 = vpack.c.b16 %v1097, %v1095
    %v1806 = vpack.c.b16 %v1098, %v1096
    %v1807 = vpack.c.b16 %v1101, %v1099
    %v1808 = vpack.c.b16 %v1102, %v1100
    %v1809 = vpack.c.b16 %v1105, %v1103
    %v1810 = vpack.c.b16 %v1106, %v1104
    %v1811 = vpack.c.b16 %v1109, %v1107
    %v1812 = vpack.c.b16 %v1110, %v1108
    %v1813 = vpack.c.b16 %v1113, %v1111
    %v1814 = vpack.c.b16 %v1114, %v1112
    %v1815 = vpack.c.b16 %v1117, %v1115
    %v1816 = vpack.c.b16 %v1118, %v1116
    %v1817 = vpack.c.b16 %v1121, %v1119
    %v1818 = vpack.c.b16 %v1122, %v1120
    %v1819 = vpack.c.b16 %v1125, %v1123
    %v1820 = vpack.c.b16 %v1126, %v1124
    %v1821 = vpack.c.b16 %v1129, %v1127
    %v1822 = vpack.c.b16 %v1130, %v1128
    %v1823 = vpack.c.b16 %v1133, %v1131
    %v1824 = vpack.c.b16 %v1134, %v1132
    %v1825 = vpack.c.b16 %v1137, %v1135
    %v1826 = vpack.c.b16 %v1138, %v1136
    %v1827 = vpack.c.b16 %v1141, %v1139
    %v1828 = vpack.c.b16 %v1142, %v1140
    %v1829 = vpack.c.b16 %v1145, %v1143
    %v1830 = vpack.c.b16 %v1146, %v1144
    %v1831 = vpack.c.b16 %v1149, %v1147
    %v1832 = vpack.c.b16 %v1150, %v1148
    %v1833 = vpack.c.b16 %v1153, %v1151
    %v1834 = vpack.c.b16 %v1154, %v1152
    %v1835 = vpack.c.b16 %v1157, %v1155
    %v1836 = vpack.c.b16 %v1158, %v1156
    %v1837 = vpack.c.b16 %v1161, %v1159
    %v1838 = vpack.c.b16 %v1162, %v1160
    %v1839 = vpack.c.b16 %v1165, %v1163
    %v1840 = vpack.c.b16 %v1166, %v1164
    %v1841 = vpack.c.b16 %v1169, %v1167
    %v1842 = vpack.c.b16 %v1170, %v1168
    %v1843 = vpack.c.b16 %v1173, %v1171
    %v1844 = vpack.c.b16 %v1174, %v1172
    %v1845 = vpack.c.b16 %v1177, %v1175
    %v1846 = vpack.c.b16 %v1178, %v1176
    %v1847 = vpack.c.b16 %v1181, %v1179
    %v1848 = vpack.c.b16 %v1182, %v1180
    %v1849 = vpack.c.b16 %v1185, %v1183
    %v1850 = vpack.c.b16 %v1186, %v1184
    %v1851 = vpack.c.b16 %v1189, %v1187
    %v1852 = vpack.c.b16 %v1190, %v1188
    %v1853 = vpack.c.b16 %v1193, %v1191
    %v1854 = vpack.c.b16 %v1194, %v1192
    %v1855 = vpack.c.b16 %v1197, %v1195
    %v1856 = vpack.c.b16 %v1198, %v1196
    %v1857 = vpack.c.b16 %v1201, %v1199
    %v1858 = vpack.c.b16 %v1202, %v1200
    %v1859 = vpack.c.b16 %v1205, %v1203
    %v1860 = vpack.c.b16 %v1206, %v1204
    %v1861 = vpack.c.b16 %v1209, %v1207
    %v1862 = vpack.c.b16 %v1210, %v1208
    %v1863 = vpack.c.b16 %v1213, %v1211
    %v1864 = vpack.c.b16 %v1214, %v1212
    %v1865 = vpack.c.b16 %v1217, %v1215
    %v1866 = vpack.c.b16 %v1218, %v1216
    %v1867 = vpack.c.b16 %v1221, %v1219
    %v1868 = vpack.c.b16 %v1222, %v1220
    %v1869 = vpack.c.b16 %v1225, %v1223
    %v1870 = vpack.c.b16 %v1226, %v1224
    %v1871 = vpack.c.b16 %v1229, %v1227
    %v1872 = vpack.c.b16 %v1230, %v1228
    %v1873 = vpack.c.b16 %v1233, %v1231
    %v1874 = vpack.c.b16 %v1234, %v1232
    %v1875 = vpack.c.b16 %v1237, %v1235
    %v1876 = vpack.c.b16 %v1238, %v1236
    %v1877 = vpack.c.b16 %v1241, %v1239
    %v1878 = vpack.c.b16 %v1242, %v1240
    %v1879 = vpack.c.b16 %v1245, %v1243
    %v1880 = vpack.c.b16 %v1246, %v1244
    %v1881 = vpack.c.b16 %v1249, %v1247
    %v1882 = vpack.c.b16 %v1250, %v1248
    %v1883 = vpack.c.b16 %v1253, %v1251
    %v1884 = vpack.c.b16 %v1254, %v1252
    %v1885 = vpack.c.b16 %v1257, %v1255
    %v1886 = vpack.c.b16 %v1258, %v1256
    %v1887 = vpack.c.b16 %v1261, %v1259
    %v1888 = vpack.c.b16 %v1262, %v1260
    %v1889 = vpack.c.b16 %v1265, %v1263
    %v1890 = vpack.c.b16 %v1266, %v1264
    %v1891 = vpack.c.b16 %v1269, %v1267
    %v1892 = vpack.c.b16 %v1270, %v1268
    %v1893 = vpack.c.b16 %v1273, %v1271
    %v1894 = vpack.c.b16 %v1274, %v1272
    %v1895 = vpack.c.b16 %v1277, %v1275
    %v1896 = vpack.c.b16 %v1278, %v1276
    %v1897 = vpack.c.b16 %v1281, %v1279
    %v1898 = vpack.c.b16 %v1282, %v1280
    %v1899 = vpack.c.b16 %v1285, %v1283
    %v1900 = vpack.c.b16 %v1286, %v1284
    %v1901 = vpack.c.b16 %v1289, %v1287
    %v1902 = vpack.c.b16 %v1290, %v1288
    %v1903 = vpack.c.b16 %v1293, %v1291
    %v1904 = vpack.c.b16 %v1294, %v1292
    %v1905 = vpack.c.b16 %v1297, %v1295
    %v1906 = vpack.c.b16 %v1298, %v1296
    %v1907 = vpack.c.b16 %v1301, %v1299
    %v1908 = vpack.c.b16 %v1302, %v1300
    %v1909 = vpack.c.b16 %v1305, %v1303
    %v1910 = vpack.c.b16 %v1306, %v1304
    %v1911 = vpack.c.b16 %v1309, %v1307
    %v1912 = vpack.c.b16 %v1310, %v1308
    %v1913 = vpack.c.b16 %v1313, %v1311
    %v1914 = vpack.c.b16 %v1314, %v1312
    %v1915 = vpack.c.b16 %v1317, %v1315
    %v1916 = vpack.c.b16 %v1318, %v1316
    %v1917 = vpack.c.b16 %v1321, %v1319
    %v1918 = vpack.c.b16 %v1322, %v1320
    %v1919 = vpack.c.b16 %v1325, %v1323
    %v1920 = vpack.c.b16 %v1326, %v1324
    %v1921 = vpack.c.b16 %v1329, %v1327
    %v1922 = vpack.c.b16 %v1330, %v1328
    %v1923 = vpack.c.b16 %v1333, %v1331
    %v1924 = vpack.c.b16 %v1334, %v1332
    %v1925 = vpack.c.b16 %v1337, %v1335
    %v1926 = vpack.c.b16 %v1338, %v1336
    %v1927 = vpack.c.b16 %v1341, %v1339
    %v1928 = vpack.c.b16 %v1342, %v1340
    %v1929 = vpack.c.b16 %v1345, %v1343
    %v1930 = vpack.c.b16 %v1346, %v1344
    %v1931 = vpack.c.b16 %v1349, %v1347
    %v1932 = vpack.c.b16 %v1350, %v1348
    %v1933 = vpack.c.b16 %v1353, %v1351
    %v1934 = vpack.c.b16 %v1354, %v1352
    %v1935 = vpack.c.b16 %v1357, %v1355
    %v1936 = vpack.c.b16 %v1358, %v1356
    %v1937 = vpack.c.b16 %v1361, %v1359
    %v1938 = vpack.c.b16 %v1362, %v1360
    %v1939 = vpack.c.b16 %v1365, %v1363
    %v1940 = vpack.c.b16 %v1366, %v1364
    %v1941 = vpack.c.b16 %v1369, %v1367
    %v1942 = vpack.c.b16 %v1370, %v1368
    %v1943 = vpack.c.b16 %v1373, %v1371
    %v1944 = vpack.c.b16 %v1374, %v1372
    %v1945 = vpack.c.b16 %v1377, %v1375
    %v1946 = vpack.c.b16 %v1378, %v1376
    %v1947 = vpack.c.b16 %v1381, %v1379
    %v1948 = vpack.c.b16 %v1382, %v1380
    %v1949 = vpack.c.b16 %v1385, %v1383
    %v1950 = vpack.c.b16 %v1386, %v1384
    %v1951 = vpack.c.b16 %v1389, %v1387
    %v1952 = vpack.c.b16 %v1390, %v1388
    %v1953 = vpack.c.b16 %v1393, %v1391
    %v1954 = vpack.c.b16 %v1394, %v1392
    %v1955 = vpack.c.b16 %v1397, %v1395
    %v1956 = vpack.c.b16 %v1398, %v1396
    %v1957 = vpack.c.b16 %v1401, %v1399
    %v1958 = vpack.c.b16 %v1402, %v1400
    %v1959 = vpack.c.b16 %v1405, %v1403
    %v1960 = vpack.c.b16 %v1406, %v1404
    %v1961 = vpack.c.b16 %v1409, %v1407
    %v1962 = vpack.c.b16 %v1410, %v1408
    %v1963 = vpack.c.b16 %v1413, %v1411
    %v1964 = vpack.c.b16 %v1414, %v1412
    %v1965 = vpack.c.b16 %v1417, %v1415
    %v1966 = vpack.c.b16 %v1418, %v1416
    %v1967 = vpack.c.b16 %v1421, %v1419
    %v1968 = vpack.c.b16 %v1422, %v1420
    %v1969 = vpack.c.b16 %v1425, %v1423
    %v1970 = vpack.c.b16 %v1426, %v1424
    %v1971 = vpack.c.b16 %v1429, %v1427
    %v1972 = vpack.c.b16 %v1430, %v1428
    %v1973 = vpack.c.b16 %v1433, %v1431
    %v1974 = vpack.c.b16 %v1434, %v1432
    %v1975 = vpack.c.b16 %v1437, %v1435
    %v1976 = vpack.c.b16 %v1438, %v1436
    %v1977 = vpack.c.b16 %v1441, %v1439
    %v1978 = vpack.c.b16 %v1442, %v1440
    %v1979 = vpack.c.b16 %v1445, %v1443
    %v1980 = vpack.c.b16 %v1446, %v1444
    %v1981 = vpack.c.b16 %v1449, %v1447
    %v1982 = vpack.c.b16 %v1450, %v1448
    %v1983 = vpack.c.b16 %v1453, %v1451
    %v1984 = vpack.c.b16 %v1454, %v1452
    %v1985 = vpack.c.b16 %v1457, %v1455
    %v1986 = vpack.c.b16 %v1458, %v1456
    %v1987 = vpack.c.b16 %v1461, %v1459
    %v1988 = vpack.c.b16 %v1462, %v1460
    %v1989 = vpack.c.b16 %v1465, %v1463
    %v1990 = vpack.c.b16 %v1466, %v1464
    %v1991 = vpack.c.b16 %v1469, %v1467
    %v1992 = vpack.c.b16 %v1470, %v1468
    %v1993 = vpack.c.b16 %v1473, %v1471
    %v1994 = vpack.c.b16 %v1474, %v1472
    %v1995 = vpack.c.b16 %v1477, %v1475
    %v1996 = vpack.c.b16 %v1478, %v1476
    %v1997 = vpack.c.b16 %v1481, %v1479
    %v1998 = vpack.c.b16 %v1482, %v1480
    %v1999 = vpack.c.b16 %v1485, %v1483
    %v2000 = vpack.c.b16 %v1486, %v1484
    %v2001 = vpack.c.b16 %v1489, %v1487
    %v2002 = vpack.c.b16 %v1490, %v1488
    %v2003 = vpack.c.b16 %v1493, %v1491
    %v2004 = vpack.c.b16 %v1494, %v1492
    %v2005 = vpack.c.b16 %v1497, %v1495
    %v2006 = vpack.c.b16 %v1498, %v1496
    %v2007 = vpack.c.b16 %v1501, %v1499
    %v2008 = vpack.c.b16 %v1502, %v1500
    %v2009 = vpack.c.b16 %v1505, %v1503
    %v2010 = vpack.c.b16 %v1506, %v1504
    %v2011 = vpack.c.b16 %v1509, %v1507
    %v2012 = vpack.c.b16 %v1510, %v1508
    %v2013 = vpack.c.b16 %v1513, %v1511
    %v2014 = vpack.c.b16 %v1514, %v1512
    %v2015 = vpack.c.b16 %v1517, %v1515
    %v2016 = vpack.c.b16 %v1518, %v1516
    %v2017 = vpack.c.b16 %v1521, %v1519
    %v2018 = vpack.c.b16 %v1522, %v1520
    %v2019 = vpack.c.b16 %v1525, %v1523
    %v2020 = vpack.c.b16 %v1526, %v1524
    %v2021 = vpack.c.b16 %v1529, %v1527
    %v2022 = vpack.c.b16 %v1530, %v1528
    %v2023 = vpack.c.b16 %v1533, %v1531
    %v2024 = vpack.c.b16 %v1534, %v1532
    %v2025 = vpack.c.b16 %v1537, %v1535
    %v2026 = vpack.c.b16 %v1538, %v1536
    %v2027 = vpack.c.b16 %v1541, %v1539
    %v2028 = vpack.c.b16 %v1542, %v1540
    %v2029 = vpack.c.b16 %v1545, %v1543
    %v2030 = vpack.c.b16 %v1546, %v1544
    %v2031 = vpack.c.b16 %v1549, %v1547
    %v2032 = vpack.c.b16 %v1550, %v1548
    %v2033 = vpack.c.b16 %v1553, %v1551
    %v2034 = vpack.c.b16 %v1554, %v1552
    %v2035 = vpack.c.b16 %v1557, %v1555
    %v2036 = vpack.c.b16 %v1558, %v1556
    %v2037 = vpack.c.b16 %v1561, %v1559
    %v2038 = vpack.c.b16 %v1562, %v1560
    %v2039 = vpack.c.b16 %v1565, %v1563
    %v2040 = vpack.c.b16 %v1566, %v1564
    %v2041 = vpack.c.b16 %v1569, %v1567
    %v2042 = vpack.c.b16 %v1570, %v1568
    %v2043 = vpack.c.b16 %v1573, %v1571
    %v2044 = vpack.c.b16 %v1574, %v1572
    %v2045 = vpack.c.b16 %v1577, %v1575
    %v2046 = vpack.c.b16 %v1578, %v1576
    %v2047 = vpack.c.b16 %v1581, %v1579
    %v2048 = vpack.c.b16 %v1582, %v1580
    %v2049 = vpack.c.b16 %v1585, %v1583
    %v2050 = vpack.c.b16 %v1586, %v1584
    %v2051 = vpack.c.b16 %v1589, %v1587
    %v2052 = vpack.c.b16 %v1590, %v1588
    %v2053 = vpack.c.b16 %v1593, %v1591
    %v2054 = vpack.c.b16 %v1594, %v1592
    %v2055 = vpack.c.b16 %v1597, %v1595
    %v2056 = vpack.c.b16 %v1598, %v1596
    %v2057 = vpack.c.b16 %v1601, %v1599
    %v2058 = vpack.c.b16 %v1602, %v1600
    %v2059 = vpack.c.b16 %v1605, %v1603
    %v2060 = vpack.c.b16 %v1606, %v1604
    %v2061 = vpack.c.b16 %v1609, %v1607
    %v2062 = vpack.c.b16 %v1610, %v1608
    %v2063 = vpack.c.b16 %v1613, %v1611
    %v2064 = vpack.c.b16 %v1614, %v1612
    %v2065 = vpack.c.b16 %v1617, %v1615
    %v2066 = vpack.c.b16 %v1618, %v1616
    %v2067 = vpack.c.b16 %v1621, %v1619
    %v2068 = vpack.c.b16 %v1622, %v1620
    %v2069 = vpack.c.b16 %v1625, %v1623
    %v2070 = vpack.c.b16 %v1626, %v1624
    %v2071 = vpack.c.b16 %v1629, %v1627
    %v2072 = vpack.c.b16 %v1630, %v1628
    %v2073 = vpack.c.b16 %v1633, %v1631
    %v2074 = vpack.c.b16 %v1634, %v1632
    %v2075 = vpack.c.b16 %v1637, %v1635
    %v2076 = vpack.c.b16 %v1638, %v1636
    %v2077 = vpack.c.b16 %v1641, %v1639
    %v2078 = vpack.c.b16 %v1642, %v1640
    %v2079 = vpack.c.b16 %v1645, %v1643
    %v2080 = vpack.c.b16 %v1646, %v1644
    %v2081 = vpack.c.b16 %v1649, %v1647
    %v2082 = vpack.c.b16 %v1650, %v1648
    %v2083 = vpack.c.b16 %v1653, %v1651
    %v2084 = vpack.c.b16 %v1654, %v1652
    %v2085 = vpack.c.b16 %v1657, %v1655
    %v2086 = vpack.c.b16 %v1658, %v1656
    %v2087 = vpack.c.b16 %v1661, %v1659
    %v2088 = vpack.c.b16 %v1662, %v1660
    %v2089 = vpack.c.b16 %v1665, %v1663
    %v2090 = vpack.c.b16 %v1666, %v1664
    %v2091 = vpack.c.b16 %v1669, %v1667
    %v2092 = vpack.c.b16 %v1670, %v1668
    %v2093 = vpack.c.b16 %v1673, %v1671
    %v2094 = vpack.c.b16 %v1674, %v1672
    %v2095 = vpack.c.b16 %v1677, %v1675
    %v2096 = vpack.c.b16 %v1678, %v1676
    %v2097 = vpack.c.b16 %v1681, %v1679
    %v2098 = vpack.c.b16 %v1682, %v1680
    %v2099 = vpack.c.b16 %v1685, %v1683
    %v2100 = vpack.c.b16 %v1686, %v1684
    %v2101 = vpack.c.b16 %v1689, %v1687
    %v2102 = vpack.c.b16 %v1690, %v1688
    %v2103 = vpack.c.b16 %v1693, %v1691
    %v2104 = vpack.c.b16 %v1694, %v1692
    %v2105 = vpack.c.b16 %v1697, %v1695
    %v2106 = vpack.c.b16 %v1698, %v1696
    %v2107 = vpack.c.b16 %v1701, %v1699
    %v2108 = vpack.c.b16 %v1702, %v1700
    %v2109 = vpack.c.b16 %v1705, %v1703
    %v2110 = vpack.c.b16 %v1706, %v1704
    %v2111 = vpack.c.b16 %v1709, %v1707
    %v2112 = vpack.c.b16 %v1710, %v1708
    %v2113 = vpack.c.b16 %v1713, %v1711
    %v2114 = vpack.c.b16 %v1714, %v1712
    %v2115 = vpack.c.b16 %v1717, %v1715
    %v2116 = vpack.c.b16 %v1718, %v1716
    %v2117 = vpack.c.b16 %v1721, %v1719
    %v2118 = vpack.c.b16 %v1722, %v1720
    %v2119 = vpack.c.b16 %v1725, %v1723
    %v2120 = vpack.c.b16 %v1726, %v1724
    %v2121 = vpack.c.b16 %v1729, %v1727
    %v2122 = vpack.c.b16 %v1730, %v1728
    %v2123 = vpack.c.b16 %v1733, %v1731
    %v2124 = vpack.c.b16 %v1734, %v1732
    %v2125 = vpack.c.b16 %v1737, %v1735
    %v2126 = vpack.c.b16 %v1738, %v1736
    %v2127 = vpack.c.b16 %v1741, %v1739
    %v2128 = vpack.c.b16 %v1742, %v1740
    %v2129 = vpack.c.b16 %v1745, %v1743
    %v2130 = vpack.c.b16 %v1746, %v1744
    %2515 = vmatprep.subr.bf16.mxu0 %v1762
    %2516 = vmatpush1.bf16.msra.mxu0 %v1761
    %2517 = vmatprep.subr.bf16.mxu0 %v1760
    %2518 = vmatpush1.bf16.msra.mxu0 %v1759
    %2519 = vmatprep.subr.bf16.mxu0 %v1758
    %2520 = vmatpush1.bf16.msra.mxu0 %v1757
    %2521 = vmatprep.subr.bf16.mxu0 %v1756
    %2522 = vmatpush1.bf16.msra.mxu0 %v1755
    %2523 = vmatprep.subr.bf16.mxu0 %v1754
    %2524 = vmatpush1.bf16.msra.mxu0 %v1753
    %2525 = vmatprep.subr.bf16.mxu0 %v1752
    %2526 = vmatpush1.bf16.msra.mxu0 %v1751
    %2527 = vmatprep.subr.bf16.mxu0 %v1750
    %2528 = vmatpush1.bf16.msra.mxu0 %v1749
    %2529 = vmatprep.subr.bf16.mxu0 %v1748
    %2530 = vmatpush1.bf16.msra.mxu0 %v1747
    %2531 = vmatprep.subr.bf16.mxu0 %v1778
    %2532 = vmatpush2.bf16.msra.mxu0 %v1777
    %2533 = vmatprep.subr.bf16.mxu0 %v1776
    %2534 = vmatpush2.bf16.msra.mxu0 %v1775
    %2535 = vmatprep.subr.bf16.mxu0 %v1774
    %2536 = vmatpush2.bf16.msra.mxu0 %v1773
    %2537 = vmatprep.subr.bf16.mxu0 %v1772
    %2538 = vmatpush2.bf16.msra.mxu0 %v1771
    %2539 = vmatprep.subr.bf16.mxu0 %v1770
    %2540 = vmatpush2.bf16.msra.mxu0 %v1769
    %2541 = vmatprep.subr.bf16.mxu0 %v1768
    %2542 = vmatpush2.bf16.msra.mxu0 %v1767
    %2543 = vmatprep.subr.bf16.mxu0 %v1766
    %2544 = vmatpush2.bf16.msra.mxu0 %v1765
    %2545 = vmatprep.subr.bf16.mxu0 %v1764
    %2546 = vmatpush2.bf16.msra.mxu0 %v1763
    %2547 = vmatprep.mubr.bf16.mxu0 %v548
    %2548 = vmatmul.mubr.bf16.gmra.mxu0 %v547
    %v2549 = vpop.f32.mrf.mxu0
    %v2550 = vadd.f32 %v504, %v2549
    %v2551 = vpop.f32.mrf.mxu0
    %v2552 = vadd.f32 %v508, %v2551
    %v2553 = vpop.f32.mrf.mxu0
    %v2554 = vpop.f32.mrf.mxu0
    %2555 = vdwg.mxu0
    %2556 = vmatprep.subr.bf16.mxu0 %v1794
    %2557 = vmatpush1.bf16.msra.mxu0 %v1793
    %2558 = vmatprep.subr.bf16.mxu0 %v1792
    %2559 = vmatpush1.bf16.msra.mxu0 %v1791
    %2560 = vmatprep.subr.bf16.mxu0 %v1790
    %2561 = vmatpush1.bf16.msra.mxu0 %v1789
    %2562 = vmatprep.subr.bf16.mxu0 %v1788
    %2563 = vmatpush1.bf16.msra.mxu0 %v1787
    %2564 = vmatprep.subr.bf16.mxu0 %v1786
    %2565 = vmatpush1.bf16.msra.mxu0 %v1785
    %2566 = vmatprep.subr.bf16.mxu0 %v1784
    %2567 = vmatpush1.bf16.msra.mxu0 %v1783
    %2568 = vmatprep.subr.bf16.mxu0 %v1782
    %2569 = vmatpush1.bf16.msra.mxu0 %v1781
    %2570 = vmatprep.subr.bf16.mxu0 %v1780
    %2571 = vmatpush1.bf16.msra.mxu0 %v1779
    %2572 = vmatprep.subr.bf16.mxu0 %v1810
    %2573 = vmatpush2.bf16.msra.mxu0 %v1809
    %2574 = vmatprep.subr.bf16.mxu0 %v1808
    %2575 = vmatpush2.bf16.msra.mxu0 %v1807
    %2576 = vmatprep.subr.bf16.mxu0 %v1806
    %2577 = vmatpush2.bf16.msra.mxu0 %v1805
    %2578 = vmatprep.subr.bf16.mxu0 %v1804
    %2579 = vmatpush2.bf16.msra.mxu0 %v1803
    %2580 = vmatprep.subr.bf16.mxu0 %v1802
    %2581 = vmatpush2.bf16.msra.mxu0 %v1801
    %2582 = vmatprep.subr.bf16.mxu0 %v1800
    %2583 = vmatpush2.bf16.msra.mxu0 %v1799
    %2584 = vmatprep.subr.bf16.mxu0 %v1798
    %2585 = vmatpush2.bf16.msra.mxu0 %v1797
    %2586 = vmatprep.subr.bf16.mxu0 %v1796
    %2587 = vmatpush2.bf16.msra.mxu0 %v1795
    %2588 = vmatprep.mubr.bf16.mxu0 %v550
    %2589 = vmatmul.mubr.bf16.gmra.mxu0 %v549
    %v2590 = vpop.f32.mrf.mxu0
    %v2591 = vadd.f32 %v2550, %v2590
    %v2592 = vpop.f32.mrf.mxu0
    %v2593 = vadd.f32 %v2552, %v2592
    %v2594 = vpop.f32.mrf.mxu0
    %v2595 = vpop.f32.mrf.mxu0
    %2596 = vdwg.mxu0
    %2597 = vmatprep.subr.bf16.mxu0 %v1826
    %2598 = vmatpush1.bf16.msra.mxu0 %v1825
    %2599 = vmatprep.subr.bf16.mxu0 %v1824
    %2600 = vmatpush1.bf16.msra.mxu0 %v1823
    %2601 = vmatprep.subr.bf16.mxu0 %v1822
    %2602 = vmatpush1.bf16.msra.mxu0 %v1821
    %2603 = vmatprep.subr.bf16.mxu0 %v1820
    %2604 = vmatpush1.bf16.msra.mxu0 %v1819
    %2605 = vmatprep.subr.bf16.mxu0 %v1818
    %2606 = vmatpush1.bf16.msra.mxu0 %v1817
    %2607 = vmatprep.subr.bf16.mxu0 %v1816
    %2608 = vmatpush1.bf16.msra.mxu0 %v1815
    %2609 = vmatprep.subr.bf16.mxu0 %v1814
    %2610 = vmatpush1.bf16.msra.mxu0 %v1813
    %2611 = vmatprep.subr.bf16.mxu0 %v1812
    %2612 = vmatpush1.bf16.msra.mxu0 %v1811
    %2613 = vmatprep.subr.bf16.mxu0 %v1842
    %2614 = vmatpush2.bf16.msra.mxu0 %v1841
    %2615 = vmatprep.subr.bf16.mxu0 %v1840
    %2616 = vmatpush2.bf16.msra.mxu0 %v1839
    %2617 = vmatprep.subr.bf16.mxu0 %v1838
    %2618 = vmatpush2.bf16.msra.mxu0 %v1837
    %2619 = vmatprep.subr.bf16.mxu0 %v1836
    %2620 = vmatpush2.bf16.msra.mxu0 %v1835
    %2621 = vmatprep.subr.bf16.mxu0 %v1834
    %2622 = vmatpush2.bf16.msra.mxu0 %v1833
    %2623 = vmatprep.subr.bf16.mxu0 %v1832
    %2624 = vmatpush2.bf16.msra.mxu0 %v1831
    %2625 = vmatprep.subr.bf16.mxu0 %v1830
    %2626 = vmatpush2.bf16.msra.mxu0 %v1829
    %2627 = vmatprep.subr.bf16.mxu0 %v1828
    %2628 = vmatpush2.bf16.msra.mxu0 %v1827
    %2629 = vmatprep.mubr.bf16.mxu0 %v552
    %2630 = vmatmul.mubr.bf16.gmra.mxu0 %v551
    %v2631 = vpop.f32.mrf.mxu0
    %v2632 = vadd.f32 %v2591, %v2631
    %v2633 = vpop.f32.mrf.mxu0
    %v2634 = vadd.f32 %v2593, %v2633
    %v2635 = vpop.f32.mrf.mxu0
    %v2636 = vpop.f32.mrf.mxu0
    %2637 = vdwg.mxu0
    %2638 = vmatprep.subr.bf16.mxu0 %v1858
    %2639 = vmatpush1.bf16.msra.mxu0 %v1857
    %2640 = vmatprep.subr.bf16.mxu0 %v1856
    %2641 = vmatpush1.bf16.msra.mxu0 %v1855
    %2642 = vmatprep.subr.bf16.mxu0 %v1854
    %2643 = vmatpush1.bf16.msra.mxu0 %v1853
    %2644 = vmatprep.subr.bf16.mxu0 %v1852
    %2645 = vmatpush1.bf16.msra.mxu0 %v1851
    %2646 = vmatprep.subr.bf16.mxu0 %v1850
    %2647 = vmatpush1.bf16.msra.mxu0 %v1849
    %2648 = vmatprep.subr.bf16.mxu0 %v1848
    %2649 = vmatpush1.bf16.msra.mxu0 %v1847
    %2650 = vmatprep.subr.bf16.mxu0 %v1846
    %2651 = vmatpush1.bf16.msra.mxu0 %v1845
    %2652 = vmatprep.subr.bf16.mxu0 %v1844
    %2653 = vmatpush1.bf16.msra.mxu0 %v1843
    %2654 = vmatprep.subr.bf16.mxu0 %v1874
    %2655 = vmatpush2.bf16.msra.mxu0 %v1873
    %2656 = vmatprep.subr.bf16.mxu0 %v1872
    %2657 = vmatpush2.bf16.msra.mxu0 %v1871
    %2658 = vmatprep.subr.bf16.mxu0 %v1870
    %2659 = vmatpush2.bf16.msra.mxu0 %v1869
    %2660 = vmatprep.subr.bf16.mxu0 %v1868
    %2661 = vmatpush2.bf16.msra.mxu0 %v1867
    %2662 = vmatprep.subr.bf16.mxu0 %v1866
    %2663 = vmatpush2.bf16.msra.mxu0 %v1865
    %2664 = vmatprep.subr.bf16.mxu0 %v1864
    %2665 = vmatpush2.bf16.msra.mxu0 %v1863
    %2666 = vmatprep.subr.bf16.mxu0 %v1862
    %2667 = vmatpush2.bf16.msra.mxu0 %v1861
    %2668 = vmatprep.subr.bf16.mxu0 %v1860
    %2669 = vmatpush2.bf16.msra.mxu0 %v1859
    %2670 = vmatprep.mubr.bf16.mxu0 %v554
    %2671 = vmatmul.mubr.bf16.gmra.mxu0 %v553
    %v2672 = vpop.f32.mrf.mxu0
    %v2673 = vadd.f32 %v2632, %v2672
    %v2674 = vpop.f32.mrf.mxu0
    %v2675 = vadd.f32 %v2634, %v2674
    %v2676 = vpop.f32.mrf.mxu0
    %v2677 = vpop.f32.mrf.mxu0
    %2678 = vdwg.mxu0
    %2679 = vmatprep.subr.bf16.mxu0 %v1890
    %2680 = vmatpush1.bf16.msra.mxu0 %v1889
    %2681 = vmatprep.subr.bf16.mxu0 %v1888
    %2682 = vmatpush1.bf16.msra.mxu0 %v1887
    %2683 = vmatprep.subr.bf16.mxu0 %v1886
    %2684 = vmatpush1.bf16.msra.mxu0 %v1885
    %2685 = vmatprep.subr.bf16.mxu0 %v1884
    %2686 = vmatpush1.bf16.msra.mxu0 %v1883
    %2687 = vmatprep.subr.bf16.mxu0 %v1882
    %2688 = vmatpush1.bf16.msra.mxu0 %v1881
    %2689 = vmatprep.subr.bf16.mxu0 %v1880
    %2690 = vmatpush1.bf16.msra.mxu0 %v1879
    %2691 = vmatprep.subr.bf16.mxu0 %v1878
    %2692 = vmatpush1.bf16.msra.mxu0 %v1877
    %2693 = vmatprep.subr.bf16.mxu0 %v1876
    %2694 = vmatpush1.bf16.msra.mxu0 %v1875
    %2695 = vmatprep.subr.bf16.mxu0 %v1906
    %2696 = vmatpush2.bf16.msra.mxu0 %v1905
    %2697 = vmatprep.subr.bf16.mxu0 %v1904
    %2698 = vmatpush2.bf16.msra.mxu0 %v1903
    %2699 = vmatprep.subr.bf16.mxu0 %v1902
    %2700 = vmatpush2.bf16.msra.mxu0 %v1901
    %2701 = vmatprep.subr.bf16.mxu0 %v1900
    %2702 = vmatpush2.bf16.msra.mxu0 %v1899
    %2703 = vmatprep.subr.bf16.mxu0 %v1898
    %2704 = vmatpush2.bf16.msra.mxu0 %v1897
    %2705 = vmatprep.subr.bf16.mxu0 %v1896
    %2706 = vmatpush2.bf16.msra.mxu0 %v1895
    %2707 = vmatprep.subr.bf16.mxu0 %v1894
    %2708 = vmatpush2.bf16.msra.mxu0 %v1893
    %2709 = vmatprep.subr.bf16.mxu0 %v1892
    %2710 = vmatpush2.bf16.msra.mxu0 %v1891
    %2711 = vmatprep.mubr.bf16.mxu0 %v556
    %2712 = vmatmul.mubr.bf16.gmra.mxu0 %v555
    %v2713 = vpop.f32.mrf.mxu0
    %v2714 = vadd.f32 %v2673, %v2713
    %v2715 = vpop.f32.mrf.mxu0
    %v2716 = vadd.f32 %v2675, %v2715
    %v2717 = vpop.f32.mrf.mxu0
    %v2718 = vpop.f32.mrf.mxu0
    %2719 = vdwg.mxu0
    %2720 = vmatprep.subr.bf16.mxu0 %v1922
    %2721 = vmatpush1.bf16.msra.mxu0 %v1921
    %2722 = vmatprep.subr.bf16.mxu0 %v1920
    %2723 = vmatpush1.bf16.msra.mxu0 %v1919
    %2724 = vmatprep.subr.bf16.mxu0 %v1918
    %2725 = vmatpush1.bf16.msra.mxu0 %v1917
    %2726 = vmatprep.subr.bf16.mxu0 %v1916
    %2727 = vmatpush1.bf16.msra.mxu0 %v1915
    %2728 = vmatprep.subr.bf16.mxu0 %v1914
    %2729 = vmatpush1.bf16.msra.mxu0 %v1913
    %2730 = vmatprep.subr.bf16.mxu0 %v1912
    %2731 = vmatpush1.bf16.msra.mxu0 %v1911
    %2732 = vmatprep.subr.bf16.mxu0 %v1910
    %2733 = vmatpush1.bf16.msra.mxu0 %v1909
    %2734 = vmatprep.subr.bf16.mxu0 %v1908
    %2735 = vmatpush1.bf16.msra.mxu0 %v1907
    %2736 = vmatprep.subr.bf16.mxu0 %v1938
    %2737 = vmatpush2.bf16.msra.mxu0 %v1937
    %2738 = vmatprep.subr.bf16.mxu0 %v1936
    %2739 = vmatpush2.bf16.msra.mxu0 %v1935
    %2740 = vmatprep.subr.bf16.mxu0 %v1934
    %2741 = vmatpush2.bf16.msra.mxu0 %v1933
    %2742 = vmatprep.subr.bf16.mxu0 %v1932
    %2743 = vmatpush2.bf16.msra.mxu0 %v1931
    %2744 = vmatprep.subr.bf16.mxu0 %v1930
    %2745 = vmatpush2.bf16.msra.mxu0 %v1929
    %2746 = vmatprep.subr.bf16.mxu0 %v1928
    %2747 = vmatpush2.bf16.msra.mxu0 %v1927
    %2748 = vmatprep.subr.bf16.mxu0 %v1926
    %2749 = vmatpush2.bf16.msra.mxu0 %v1925
    %2750 = vmatprep.subr.bf16.mxu0 %v1924
    %2751 = vmatpush2.bf16.msra.mxu0 %v1923
    %2752 = vmatprep.mubr.bf16.mxu0 %v558
    %2753 = vmatmul.mubr.bf16.gmra.mxu0 %v557
    %v2754 = vpop.f32.mrf.mxu0
    %v2755 = vadd.f32 %v2714, %v2754
    %v2756 = vpop.f32.mrf.mxu0
    %v2757 = vadd.f32 %v2716, %v2756
    %v2758 = vpop.f32.mrf.mxu0
    %v2759 = vpop.f32.mrf.mxu0
    %2760 = vdwg.mxu0
    %2761 = vmatprep.subr.bf16.mxu0 %v1954
    %2762 = vmatpush1.bf16.msra.mxu0 %v1953
    %2763 = vmatprep.subr.bf16.mxu0 %v1952
    %2764 = vmatpush1.bf16.msra.mxu0 %v1951
    %2765 = vmatprep.subr.bf16.mxu0 %v1950
    %2766 = vmatpush1.bf16.msra.mxu0 %v1949
    %2767 = vmatprep.subr.bf16.mxu0 %v1948
    %2768 = vmatpush1.bf16.msra.mxu0 %v1947
    %2769 = vmatprep.subr.bf16.mxu0 %v1946
    %2770 = vmatpush1.bf16.msra.mxu0 %v1945
    %2771 = vmatprep.subr.bf16.mxu0 %v1944
    %2772 = vmatpush1.bf16.msra.mxu0 %v1943
    %2773 = vmatprep.subr.bf16.mxu0 %v1942
    %2774 = vmatpush1.bf16.msra.mxu0 %v1941
    %2775 = vmatprep.subr.bf16.mxu0 %v1940
    %2776 = vmatpush1.bf16.msra.mxu0 %v1939
    %2777 = vmatprep.subr.bf16.mxu0 %v1970
    %2778 = vmatpush2.bf16.msra.mxu0 %v1969
    %2779 = vmatprep.subr.bf16.mxu0 %v1968
    %2780 = vmatpush2.bf16.msra.mxu0 %v1967
    %2781 = vmatprep.subr.bf16.mxu0 %v1966
    %2782 = vmatpush2.bf16.msra.mxu0 %v1965
    %2783 = vmatprep.subr.bf16.mxu0 %v1964
    %2784 = vmatpush2.bf16.msra.mxu0 %v1963
    %2785 = vmatprep.subr.bf16.mxu0 %v1962
    %2786 = vmatpush2.bf16.msra.mxu0 %v1961
    %2787 = vmatprep.subr.bf16.mxu0 %v1960
    %2788 = vmatpush2.bf16.msra.mxu0 %v1959
    %2789 = vmatprep.subr.bf16.mxu0 %v1958
    %2790 = vmatpush2.bf16.msra.mxu0 %v1957
    %2791 = vmatprep.subr.bf16.mxu0 %v1956
    %2792 = vmatpush2.bf16.msra.mxu0 %v1955
    %2793 = vmatprep.mubr.bf16.mxu0 %v560
    %2794 = vmatmul.mubr.bf16.gmra.mxu0 %v559
    %v2795 = vpop.f32.mrf.mxu0
    %v2796 = vadd.f32 %v2755, %v2795
    %v2797 = vpop.f32.mrf.mxu0
    %v2798 = vadd.f32 %v2757, %v2797
    %v2799 = vpop.f32.mrf.mxu0
    %v2800 = vpop.f32.mrf.mxu0
    %2801 = vdwg.mxu0
    %2802 = vmatprep.subr.bf16.mxu0 %v1986
    %2803 = vmatpush1.bf16.msra.mxu0 %v1985
    %2804 = vmatprep.subr.bf16.mxu0 %v1984
    %2805 = vmatpush1.bf16.msra.mxu0 %v1983
    %2806 = vmatprep.subr.bf16.mxu0 %v1982
    %2807 = vmatpush1.bf16.msra.mxu0 %v1981
    %2808 = vmatprep.subr.bf16.mxu0 %v1980
    %2809 = vmatpush1.bf16.msra.mxu0 %v1979
    %2810 = vmatprep.subr.bf16.mxu0 %v1978
    %2811 = vmatpush1.bf16.msra.mxu0 %v1977
    %2812 = vmatprep.subr.bf16.mxu0 %v1976
    %2813 = vmatpush1.bf16.msra.mxu0 %v1975
    %2814 = vmatprep.subr.bf16.mxu0 %v1974
    %2815 = vmatpush1.bf16.msra.mxu0 %v1973
    %2816 = vmatprep.subr.bf16.mxu0 %v1972
    %2817 = vmatpush1.bf16.msra.mxu0 %v1971
    %2818 = vmatprep.subr.bf16.mxu0 %v2002
    %2819 = vmatpush2.bf16.msra.mxu0 %v2001
    %2820 = vmatprep.subr.bf16.mxu0 %v2000
    %2821 = vmatpush2.bf16.msra.mxu0 %v1999
    %2822 = vmatprep.subr.bf16.mxu0 %v1998
    %2823 = vmatpush2.bf16.msra.mxu0 %v1997
    %2824 = vmatprep.subr.bf16.mxu0 %v1996
    %2825 = vmatpush2.bf16.msra.mxu0 %v1995
    %2826 = vmatprep.subr.bf16.mxu0 %v1994
    %2827 = vmatpush2.bf16.msra.mxu0 %v1993
    %2828 = vmatprep.subr.bf16.mxu0 %v1992
    %2829 = vmatpush2.bf16.msra.mxu0 %v1991
    %2830 = vmatprep.subr.bf16.mxu0 %v1990
    %2831 = vmatpush2.bf16.msra.mxu0 %v1989
    %2832 = vmatprep.subr.bf16.mxu0 %v1988
    %2833 = vmatpush2.bf16.msra.mxu0 %v1987
    %2834 = vmatprep.mubr.bf16.mxu0 %v562
    %2835 = vmatmul.mubr.bf16.gmra.mxu0 %v561
    %v2836 = vpop.f32.mrf.mxu0
    %v2837 = vadd.f32 %v2796, %v2836
    %v2838 = vpop.f32.mrf.mxu0
    %v2839 = vadd.f32 %v2798, %v2838
    %v2840 = vpop.f32.mrf.mxu0
    %v2841 = vpop.f32.mrf.mxu0
    %2842 = vdwg.mxu0
    %2843 = vmatprep.subr.bf16.mxu0 %v2018
    %2844 = vmatpush1.bf16.msra.mxu0 %v2017
    %2845 = vmatprep.subr.bf16.mxu0 %v2016
    %2846 = vmatpush1.bf16.msra.mxu0 %v2015
    %2847 = vmatprep.subr.bf16.mxu0 %v2014
    %2848 = vmatpush1.bf16.msra.mxu0 %v2013
    %2849 = vmatprep.subr.bf16.mxu0 %v2012
    %2850 = vmatpush1.bf16.msra.mxu0 %v2011
    %2851 = vmatprep.subr.bf16.mxu0 %v2010
    %2852 = vmatpush1.bf16.msra.mxu0 %v2009
    %2853 = vmatprep.subr.bf16.mxu0 %v2008
    %2854 = vmatpush1.bf16.msra.mxu0 %v2007
    %2855 = vmatprep.subr.bf16.mxu0 %v2006
    %2856 = vmatpush1.bf16.msra.mxu0 %v2005
    %2857 = vmatprep.subr.bf16.mxu0 %v2004
    %2858 = vmatpush1.bf16.msra.mxu0 %v2003
    %2859 = vmatprep.subr.bf16.mxu0 %v2034
    %2860 = vmatpush2.bf16.msra.mxu0 %v2033
    %2861 = vmatprep.subr.bf16.mxu0 %v2032
    %2862 = vmatpush2.bf16.msra.mxu0 %v2031
    %2863 = vmatprep.subr.bf16.mxu0 %v2030
    %2864 = vmatpush2.bf16.msra.mxu0 %v2029
    %2865 = vmatprep.subr.bf16.mxu0 %v2028
    %2866 = vmatpush2.bf16.msra.mxu0 %v2027
    %2867 = vmatprep.subr.bf16.mxu0 %v2026
    %2868 = vmatpush2.bf16.msra.mxu0 %v2025
    %2869 = vmatprep.subr.bf16.mxu0 %v2024
    %2870 = vmatpush2.bf16.msra.mxu0 %v2023
    %2871 = vmatprep.subr.bf16.mxu0 %v2022
    %2872 = vmatpush2.bf16.msra.mxu0 %v2021
    %2873 = vmatprep.subr.bf16.mxu0 %v2020
    %2874 = vmatpush2.bf16.msra.mxu0 %v2019
    %2875 = vmatprep.mubr.bf16.mxu0 %v564
    %2876 = vmatmul.mubr.bf16.gmra.mxu0 %v563
    %v2877 = vpop.f32.mrf.mxu0
    %v2878 = vadd.f32 %v2837, %v2877
    %v2879 = vpop.f32.mrf.mxu0
    %v2880 = vadd.f32 %v2839, %v2879
    %v2881 = vpop.f32.mrf.mxu0
    %v2882 = vpop.f32.mrf.mxu0
    %2883 = vdwg.mxu0
    %2884 = vmatprep.subr.bf16.mxu0 %v2050
    %2885 = vmatpush1.bf16.msra.mxu0 %v2049
    %2886 = vmatprep.subr.bf16.mxu0 %v2048
    %2887 = vmatpush1.bf16.msra.mxu0 %v2047
    %2888 = vmatprep.subr.bf16.mxu0 %v2046
    %2889 = vmatpush1.bf16.msra.mxu0 %v2045
    %2890 = vmatprep.subr.bf16.mxu0 %v2044
    %2891 = vmatpush1.bf16.msra.mxu0 %v2043
    %2892 = vmatprep.subr.bf16.mxu0 %v2042
    %2893 = vmatpush1.bf16.msra.mxu0 %v2041
    %2894 = vmatprep.subr.bf16.mxu0 %v2040
    %2895 = vmatpush1.bf16.msra.mxu0 %v2039
    %2896 = vmatprep.subr.bf16.mxu0 %v2038
    %2897 = vmatpush1.bf16.msra.mxu0 %v2037
    %2898 = vmatprep.subr.bf16.mxu0 %v2036
    %2899 = vmatpush1.bf16.msra.mxu0 %v2035
    %2900 = vmatprep.subr.bf16.mxu0 %v2066
    %2901 = vmatpush2.bf16.msra.mxu0 %v2065
    %2902 = vmatprep.subr.bf16.mxu0 %v2064
    %2903 = vmatpush2.bf16.msra.mxu0 %v2063
    %2904 = vmatprep.subr.bf16.mxu0 %v2062
    %2905 = vmatpush2.bf16.msra.mxu0 %v2061
    %2906 = vmatprep.subr.bf16.mxu0 %v2060
    %2907 = vmatpush2.bf16.msra.mxu0 %v2059
    %2908 = vmatprep.subr.bf16.mxu0 %v2058
    %2909 = vmatpush2.bf16.msra.mxu0 %v2057
    %2910 = vmatprep.subr.bf16.mxu0 %v2056
    %2911 = vmatpush2.bf16.msra.mxu0 %v2055
    %2912 = vmatprep.subr.bf16.mxu0 %v2054
    %2913 = vmatpush2.bf16.msra.mxu0 %v2053
    %2914 = vmatprep.subr.bf16.mxu0 %v2052
    %2915 = vmatpush2.bf16.msra.mxu0 %v2051
    %2916 = vmatprep.mubr.bf16.mxu0 %v566
    %2917 = vmatmul.mubr.bf16.gmra.mxu0 %v565
    %v2918 = vpop.f32.mrf.mxu0
    %v2919 = vadd.f32 %v2878, %v2918
    %v2920 = vpop.f32.mrf.mxu0
    %v2921 = vadd.f32 %v2880, %v2920
    %v2922 = vpop.f32.mrf.mxu0
    %v2923 = vpop.f32.mrf.mxu0
    %2924 = vdwg.mxu0
    %2925 = vmatprep.subr.bf16.mxu0 %v2082
    %2926 = vmatpush1.bf16.msra.mxu0 %v2081
    %2927 = vmatprep.subr.bf16.mxu0 %v2080
    %2928 = vmatpush1.bf16.msra.mxu0 %v2079
    %2929 = vmatprep.subr.bf16.mxu0 %v2078
    %2930 = vmatpush1.bf16.msra.mxu0 %v2077
    %2931 = vmatprep.subr.bf16.mxu0 %v2076
    %2932 = vmatpush1.bf16.msra.mxu0 %v2075
    %2933 = vmatprep.subr.bf16.mxu0 %v2074
    %2934 = vmatpush1.bf16.msra.mxu0 %v2073
    %2935 = vmatprep.subr.bf16.mxu0 %v2072
    %2936 = vmatpush1.bf16.msra.mxu0 %v2071
    %2937 = vmatprep.subr.bf16.mxu0 %v2070
    %2938 = vmatpush1.bf16.msra.mxu0 %v2069
    %2939 = vmatprep.subr.bf16.mxu0 %v2068
    %2940 = vmatpush1.bf16.msra.mxu0 %v2067
    %2941 = vmatprep.subr.bf16.mxu0 %v2098
    %2942 = vmatpush2.bf16.msra.mxu0 %v2097
    %2943 = vmatprep.subr.bf16.mxu0 %v2096
    %2944 = vmatpush2.bf16.msra.mxu0 %v2095
    %2945 = vmatprep.subr.bf16.mxu0 %v2094
    %2946 = vmatpush2.bf16.msra.mxu0 %v2093
    %2947 = vmatprep.subr.bf16.mxu0 %v2092
    %2948 = vmatpush2.bf16.msra.mxu0 %v2091
    %2949 = vmatprep.subr.bf16.mxu0 %v2090
    %2950 = vmatpush2.bf16.msra.mxu0 %v2089
    %2951 = vmatprep.subr.bf16.mxu0 %v2088
    %2952 = vmatpush2.bf16.msra.mxu0 %v2087
    %2953 = vmatprep.subr.bf16.mxu0 %v2086
    %2954 = vmatpush2.bf16.msra.mxu0 %v2085
    %2955 = vmatprep.subr.bf16.mxu0 %v2084
    %2956 = vmatpush2.bf16.msra.mxu0 %v2083
    %2957 = vmatprep.mubr.bf16.mxu0 %v568
    %2958 = vmatmul.mubr.bf16.gmra.mxu0 %v567
    %v2959 = vpop.f32.mrf.mxu0
    %v2960 = vadd.f32 %v2919, %v2959
    %v2961 = vpop.f32.mrf.mxu0
    %v2962 = vadd.f32 %v2921, %v2961
    %v2963 = vpop.f32.mrf.mxu0
    %v2964 = vpop.f32.mrf.mxu0
    %2965 = vdwg.mxu0
    %2966 = vmatprep.subr.bf16.mxu0 %v2114
    %2967 = vmatpush1.bf16.msra.mxu0 %v2113
    %2968 = vmatprep.subr.bf16.mxu0 %v2112
    %2969 = vmatpush1.bf16.msra.mxu0 %v2111
    %2970 = vmatprep.subr.bf16.mxu0 %v2110
    %2971 = vmatpush1.bf16.msra.mxu0 %v2109
    %2972 = vmatprep.subr.bf16.mxu0 %v2108
    %2973 = vmatpush1.bf16.msra.mxu0 %v2107
    %2974 = vmatprep.subr.bf16.mxu0 %v2106
    %2975 = vmatpush1.bf16.msra.mxu0 %v2105
    %2976 = vmatprep.subr.bf16.mxu0 %v2104
    %2977 = vmatpush1.bf16.msra.mxu0 %v2103
    %2978 = vmatprep.subr.bf16.mxu0 %v2102
    %2979 = vmatpush1.bf16.msra.mxu0 %v2101
    %2980 = vmatprep.subr.bf16.mxu0 %v2100
    %2981 = vmatpush1.bf16.msra.mxu0 %v2099
    %2982 = vmatprep.subr.bf16.mxu0 %v2130
    %2983 = vmatpush2.bf16.msra.mxu0 %v2129
    %2984 = vmatprep.subr.bf16.mxu0 %v2128
    %2985 = vmatpush2.bf16.msra.mxu0 %v2127
    %2986 = vmatprep.subr.bf16.mxu0 %v2126
    %2987 = vmatpush2.bf16.msra.mxu0 %v2125
    %2988 = vmatprep.subr.bf16.mxu0 %v2124
    %2989 = vmatpush2.bf16.msra.mxu0 %v2123
    %2990 = vmatprep.subr.bf16.mxu0 %v2122
    %2991 = vmatpush2.bf16.msra.mxu0 %v2121
    %2992 = vmatprep.subr.bf16.mxu0 %v2120
    %2993 = vmatpush2.bf16.msra.mxu0 %v2119
    %2994 = vmatprep.subr.bf16.mxu0 %v2118
    %2995 = vmatpush2.bf16.msra.mxu0 %v2117
    %2996 = vmatprep.subr.bf16.mxu0 %v2116
    %2997 = vmatpush2.bf16.msra.mxu0 %v2115
    %2998 = vmatprep.mubr.bf16.mxu0 %v570
    %2999 = vmatmul.mubr.bf16.gmra.mxu0 %v569
    %v3000 = vpop.f32.mrf.mxu0
    %v3001 = vadd.f32 %v2960, %v3000
    %v3002 = vpop.f32.mrf.mxu0
    %v3003 = vadd.f32 %v2962, %v3002
    %v3004 = vpop.f32.mrf.mxu0
    %v3005 = vpop.f32.mrf.mxu0
    %3006 = vdwg.mxu0
    %v3007 = vtanh.pop %v3001
    %v3008 = vtanh.pop %v3003
    %v3009 = vpack.c.bf16 %v3007, %v3007
    %v3010 = vpack.c.bf16 %v3008, %v3008
    %v3011 = vld [vmem:[#allocation6] sm:$0xff]
    %v3012 = vld [vmem:[#allocation6 + $0x8] sm:$0xff]
    %v3013 = vld [vmem:[#allocation6 + $0x10] sm:$0xff]
    %v3014 = vld [vmem:[#allocation6 + $0x18] sm:$0xff]
    %v3015 = vld [vmem:[#allocation6 + $0x20] sm:$0xff]
    %v3016 = vld [vmem:[#allocation6 + $0x28] sm:$0xff]
    %v3017 = vld [vmem:[#allocation6 + $0x30] sm:$0xff]
    %v3018 = vld [vmem:[#allocation6 + $0x38] sm:$0xff]
    %v3019 = vld [vmem:[#allocation6 + $0x40] sm:$0xff]
    %v3020 = vld [vmem:[#allocation6 + $0x48] sm:$0xff]
    %v3021 = vld [vmem:[#allocation6 + $0x50] sm:$0xff]
    %v3022 = vld [vmem:[#allocation6 + $0x58] sm:$0xff]
    %v3023 = vld [vmem:[#allocation6 + $0x60] sm:$0xff]
    %v3024 = vld [vmem:[#allocation6 + $0x68] sm:$0xff]
    %v3025 = vld [vmem:[#allocation6 + $0x70] sm:$0xff]
    %v3026 = vld [vmem:[#allocation6 + $0x78] sm:$0xff]
    %v3027 = vld [vmem:[#allocation6 + $0x80] sm:$0xff]
    %v3028 = vld [vmem:[#allocation6 + $0x88] sm:$0xff]
    %v3029 = vld [vmem:[#allocation6 + $0x90] sm:$0xff]
    %v3030 = vld [vmem:[#allocation6 + $0x98] sm:$0xff]
    %v3031 = vld [vmem:[#allocation6 + $0xa0] sm:$0xff]
    %v3032 = vld [vmem:[#allocation6 + $0xa8] sm:$0xff]
    %v3033 = vld [vmem:[#allocation6 + $0xb0] sm:$0xff]
    %v3034 = vld [vmem:[#allocation6 + $0xb8] sm:$0xff]
    %v3035 = vld [vmem:[#allocation6 + $0xc0] sm:$0xff]
    %v3036 = vld [vmem:[#allocation6 + $0xc8] sm:$0xff]
    %v3037 = vld [vmem:[#allocation6 + $0xd0] sm:$0xff]
    %v3038 = vld [vmem:[#allocation6 + $0xd8] sm:$0xff]
    %v3039 = vld [vmem:[#allocation6 + $0xe0] sm:$0xff]
    %v3040 = vld [vmem:[#allocation6 + $0xe8] sm:$0xff]
    %v3041 = vld [vmem:[#allocation6 + $0xf0] sm:$0xff]
    %v3042 = vld [vmem:[#allocation6 + $0xf8] sm:$0xff]
    %v3043 = vld [vmem:[#allocation7] sm:$0x3]
    %v3045 = vlaneseq
    %v3046 = vshrl.u32 %v3045, 7
    %v3047 = vsub.s32 0, %v3046
    %v3048 = vrot.slane %v3043, %v3047
    %v3049 = vlaneseq
    %v3050 = vshrl.u32 %v3049, 7
    %v3051 = vsub.s32 1, %v3050
    %v3052 = vrot.slane %v3043, %v3051
    %v3087 = vunpack.c.l.b16 %v3011
    %v3088 = vunpack.c.h.b16 %v3011
    %v3089 = vunpack.c.l.b16 %v3012
    %v3090 = vunpack.c.h.b16 %v3012
    %v3091 = vunpack.c.l.b16 %v3013
    %v3092 = vunpack.c.h.b16 %v3013
    %v3093 = vunpack.c.l.b16 %v3014
    %v3094 = vunpack.c.h.b16 %v3014
    %v3095 = vunpack.c.l.b16 %v3015
    %v3096 = vunpack.c.h.b16 %v3015
    %v3097 = vunpack.c.l.b16 %v3016
    %v3098 = vunpack.c.h.b16 %v3016
    %v3099 = vunpack.c.l.b16 %v3017
    %v3100 = vunpack.c.h.b16 %v3017
    %v3101 = vunpack.c.l.b16 %v3018
    %v3102 = vunpack.c.h.b16 %v3018
    %v3103 = vunpack.c.l.b16 %v3019
    %v3104 = vunpack.c.h.b16 %v3019
    %v3105 = vunpack.c.l.b16 %v3020
    %v3106 = vunpack.c.h.b16 %v3020
    %v3107 = vunpack.c.l.b16 %v3021
    %v3108 = vunpack.c.h.b16 %v3021
    %v3109 = vunpack.c.l.b16 %v3022
    %v3110 = vunpack.c.h.b16 %v3022
    %v3111 = vunpack.c.l.b16 %v3023
    %v3112 = vunpack.c.h.b16 %v3023
    %v3113 = vunpack.c.l.b16 %v3024
    %v3114 = vunpack.c.h.b16 %v3024
    %v3115 = vunpack.c.l.b16 %v3025
    %v3116 = vunpack.c.h.b16 %v3025
    %v3117 = vunpack.c.l.b16 %v3026
    %v3118 = vunpack.c.h.b16 %v3026
    %v3119 = vunpack.c.l.b16 %v3027
    %v3120 = vunpack.c.h.b16 %v3027
    %v3121 = vunpack.c.l.b16 %v3028
    %v3122 = vunpack.c.h.b16 %v3028
    %v3123 = vunpack.c.l.b16 %v3029
    %v3124 = vunpack.c.h.b16 %v3029
    %v3125 = vunpack.c.l.b16 %v3030
    %v3126 = vunpack.c.h.b16 %v3030
    %v3127 = vunpack.c.l.b16 %v3031
    %v3128 = vunpack.c.h.b16 %v3031
    %v3129 = vunpack.c.l.b16 %v3032
    %v3130 = vunpack.c.h.b16 %v3032
    %v3131 = vunpack.c.l.b16 %v3033
    %v3132 = vunpack.c.h.b16 %v3033
    %v3133 = vunpack.c.l.b16 %v3034
    %v3134 = vunpack.c.h.b16 %v3034
    %v3135 = vunpack.c.l.b16 %v3035
    %v3136 = vunpack.c.h.b16 %v3035
    %v3137 = vunpack.c.l.b16 %v3036
    %v3138 = vunpack.c.h.b16 %v3036
    %v3139 = vunpack.c.l.b16 %v3037
    %v3140 = vunpack.c.h.b16 %v3037
    %v3141 = vunpack.c.l.b16 %v3038
    %v3142 = vunpack.c.h.b16 %v3038
    %v3143 = vunpack.c.l.b16 %v3039
    %v3144 = vunpack.c.h.b16 %v3039
    %v3145 = vunpack.c.l.b16 %v3040
    %v3146 = vunpack.c.h.b16 %v3040
    %v3147 = vunpack.c.l.b16 %v3041
    %v3148 = vunpack.c.h.b16 %v3041
    %v3149 = vunpack.c.l.b16 %v3042
    %v3150 = vunpack.c.h.b16 %v3042
    %v3151 = vpack.c.b16 %v3089, %v3087
    %v3152 = vpack.c.b16 %v3090, %v3088
    %v3153 = vpack.c.b16 %v3093, %v3091
    %v3154 = vpack.c.b16 %v3094, %v3092
    %v3155 = vpack.c.b16 %v3097, %v3095
    %v3156 = vpack.c.b16 %v3098, %v3096
    %v3157 = vpack.c.b16 %v3101, %v3099
    %v3158 = vpack.c.b16 %v3102, %v3100
    %v3159 = vpack.c.b16 %v3105, %v3103
    %v3160 = vpack.c.b16 %v3106, %v3104
    %v3161 = vpack.c.b16 %v3109, %v3107
    %v3162 = vpack.c.b16 %v3110, %v3108
    %v3163 = vpack.c.b16 %v3113, %v3111
    %v3164 = vpack.c.b16 %v3114, %v3112
    %v3165 = vpack.c.b16 %v3117, %v3115
    %v3166 = vpack.c.b16 %v3118, %v3116
    %v3167 = vpack.c.b16 %v3121, %v3119
    %v3168 = vpack.c.b16 %v3122, %v3120
    %v3169 = vpack.c.b16 %v3125, %v3123
    %v3170 = vpack.c.b16 %v3126, %v3124
    %v3171 = vpack.c.b16 %v3129, %v3127
    %v3172 = vpack.c.b16 %v3130, %v3128
    %v3173 = vpack.c.b16 %v3133, %v3131
    %v3174 = vpack.c.b16 %v3134, %v3132
    %v3175 = vpack.c.b16 %v3137, %v3135
    %v3176 = vpack.c.b16 %v3138, %v3136
    %v3177 = vpack.c.b16 %v3141, %v3139
    %v3178 = vpack.c.b16 %v3142, %v3140
    %v3179 = vpack.c.b16 %v3145, %v3143
    %v3180 = vpack.c.b16 %v3146, %v3144
    %v3181 = vpack.c.b16 %v3149, %v3147
    %v3182 = vpack.c.b16 %v3150, %v3148
    %3215 = vmatprep.subr.bf16.mxu0 %v3166
    %3216 = vmatpush1.bf16.msra.mxu0 %v3165
    %3217 = vmatprep.subr.bf16.mxu0 %v3164
    %3218 = vmatpush1.bf16.msra.mxu0 %v3163
    %3219 = vmatprep.subr.bf16.mxu0 %v3162
    %3220 = vmatpush1.bf16.msra.mxu0 %v3161
    %3221 = vmatprep.subr.bf16.mxu0 %v3160
    %3222 = vmatpush1.bf16.msra.mxu0 %v3159
    %3223 = vmatprep.subr.bf16.mxu0 %v3158
    %3224 = vmatpush1.bf16.msra.mxu0 %v3157
    %3225 = vmatprep.subr.bf16.mxu0 %v3156
    %3226 = vmatpush1.bf16.msra.mxu0 %v3155
    %3227 = vmatprep.subr.bf16.mxu0 %v3154
    %3228 = vmatpush1.bf16.msra.mxu0 %v3153
    %3229 = vmatprep.subr.bf16.mxu0 %v3152
    %3230 = vmatpush1.bf16.msra.mxu0 %v3151
    %3231 = vmatprep.subr.bf16.mxu0 %v3182
    %3232 = vmatpush2.bf16.msra.mxu0 %v3181
    %3233 = vmatprep.subr.bf16.mxu0 %v3180
    %3234 = vmatpush2.bf16.msra.mxu0 %v3179
    %3235 = vmatprep.subr.bf16.mxu0 %v3178
    %3236 = vmatpush2.bf16.msra.mxu0 %v3177
    %3237 = vmatprep.subr.bf16.mxu0 %v3176
    %3238 = vmatpush2.bf16.msra.mxu0 %v3175
    %3239 = vmatprep.subr.bf16.mxu0 %v3174
    %3240 = vmatpush2.bf16.msra.mxu0 %v3173
    %3241 = vmatprep.subr.bf16.mxu0 %v3172
    %3242 = vmatpush2.bf16.msra.mxu0 %v3171
    %3243 = vmatprep.subr.bf16.mxu0 %v3170
    %3244 = vmatpush2.bf16.msra.mxu0 %v3169
    %3245 = vmatprep.subr.bf16.mxu0 %v3168
    %3246 = vmatpush2.bf16.msra.mxu0 %v3167
    %3247 = vmatprep.mubr.bf16.mxu0 %v3010
    %3248 = vmatmul.mubr.bf16.gmra.mxu0 %v3009
    %v3249 = vpop.f32.mrf.mxu0
    %v3250 = vadd.f32 %v3048, %v3249
    %v3251 = vpop.f32.mrf.mxu0
    %v3252 = vadd.f32 %v3052, %v3251
    %v3253 = vpop.f32.mrf.mxu0
    %v3254 = vpop.f32.mrf.mxu0
    %3255 = vdwg.mxu0
    %v3256 = vtanh.pop %v3250
    %v3257 = vtanh.pop %v3252
    %v3258 = vpack.c.bf16 %v3256, %v3256
    %v3259 = vpack.c.bf16 %v3257, %v3257
    %v3260 = vld [vmem:[#allocation9] sm:$0xf]
    %v3261 = vld [vmem:[#allocation9 + $0x4] sm:$0xf]
    %v3262 = vld [vmem:[#allocation9 + $0x8] sm:$0xf]
    %v3263 = vld [vmem:[#allocation9 + $0xc] sm:$0xf]
    %v3264 = vld [vmem:[#allocation9 + $0x10] sm:$0xf]
    %v3265 = vld [vmem:[#allocation9 + $0x14] sm:$0xf]
    %v3266 = vld [vmem:[#allocation9 + $0x18] sm:$0xf]
    %v3267 = vld [vmem:[#allocation9 + $0x1c] sm:$0xf]
    %v3268 = vld [vmem:[#allocation9 + $0x20] sm:$0xf]
    %v3269 = vld [vmem:[#allocation9 + $0x24] sm:$0xf]
    %v3270 = vld [vmem:[#allocation9 + $0x28] sm:$0xf]
    %v3271 = vld [vmem:[#allocation9 + $0x2c] sm:$0xf]
    %v3272 = vld [vmem:[#allocation9 + $0x30] sm:$0xf]
    %v3273 = vld [vmem:[#allocation9 + $0x34] sm:$0xf]
    %v3274 = vld [vmem:[#allocation9 + $0x38] sm:$0xf]
    %v3275 = vld [vmem:[#allocation9 + $0x3c] sm:$0xf]
    %v3276 = vld [vmem:[#allocation9 + $0x40] sm:$0xf]
    %v3277 = vld [vmem:[#allocation9 + $0x44] sm:$0xf]
    %v3278 = vld [vmem:[#allocation9 + $0x48] sm:$0xf]
    %v3279 = vld [vmem:[#allocation9 + $0x4c] sm:$0xf]
    %v3280 = vld [vmem:[#allocation9 + $0x50] sm:$0xf]
    %v3281 = vld [vmem:[#allocation9 + $0x54] sm:$0xf]
    %v3282 = vld [vmem:[#allocation9 + $0x58] sm:$0xf]
    %v3283 = vld [vmem:[#allocation9 + $0x5c] sm:$0xf]
    %v3284 = vld [vmem:[#allocation9 + $0x60] sm:$0xf]
    %v3285 = vld [vmem:[#allocation9 + $0x64] sm:$0xf]
    %v3286 = vld [vmem:[#allocation9 + $0x68] sm:$0xf]
    %v3287 = vld [vmem:[#allocation9 + $0x6c] sm:$0xf]
    %v3288 = vld [vmem:[#allocation9 + $0x70] sm:$0xf]
    %v3289 = vld [vmem:[#allocation9 + $0x74] sm:$0xf]
    %v3290 = vld [vmem:[#allocation9 + $0x78] sm:$0xf]
    %v3291 = vld [vmem:[#allocation9 + $0x7c] sm:$0xf]
    %v3292 = vld [vmem:[#allocation10] sm:$0x1]
    %v3294 = vlaneseq
    %v3295 = vshrl.u32 %v3294, 7
    %v3296 = vsub.s32 0, %v3295
    %v3297 = vrot.slane %v3292, %v3296
    %v3331 = vunpack.c.l.b16 %v3260
    %v3332 = vunpack.c.l.b16 %v3261
    %v3333 = vunpack.c.l.b16 %v3262
    %v3334 = vunpack.c.l.b16 %v3263
    %v3335 = vunpack.c.l.b16 %v3264
    %v3336 = vunpack.c.l.b16 %v3265
    %v3337 = vunpack.c.l.b16 %v3266
    %v3338 = vunpack.c.l.b16 %v3267
    %v3339 = vunpack.c.l.b16 %v3268
    %v3340 = vunpack.c.l.b16 %v3269
    %v3341 = vunpack.c.l.b16 %v3270
    %v3342 = vunpack.c.l.b16 %v3271
    %v3343 = vunpack.c.l.b16 %v3272
    %v3344 = vunpack.c.l.b16 %v3273
    %v3345 = vunpack.c.l.b16 %v3274
    %v3346 = vunpack.c.l.b16 %v3275
    %v3347 = vunpack.c.l.b16 %v3276
    %v3348 = vunpack.c.l.b16 %v3277
    %v3349 = vunpack.c.l.b16 %v3278
    %v3350 = vunpack.c.l.b16 %v3279
    %v3351 = vunpack.c.l.b16 %v3280
    %v3352 = vunpack.c.l.b16 %v3281
    %v3353 = vunpack.c.l.b16 %v3282
    %v3354 = vunpack.c.l.b16 %v3283
    %v3355 = vunpack.c.l.b16 %v3284
    %v3356 = vunpack.c.l.b16 %v3285
    %v3357 = vunpack.c.l.b16 %v3286
    %v3358 = vunpack.c.l.b16 %v3287
    %v3359 = vunpack.c.l.b16 %v3288
    %v3360 = vunpack.c.l.b16 %v3289
    %v3361 = vunpack.c.l.b16 %v3290
    %v3362 = vunpack.c.l.b16 %v3291
    %v3363 = vpack.c.b16 %v3332, %v3331
    %v3364 = vpack.c.b16 %v3334, %v3333
    %v3365 = vpack.c.b16 %v3336, %v3335
    %v3366 = vpack.c.b16 %v3338, %v3337
    %v3367 = vpack.c.b16 %v3340, %v3339
    %v3368 = vpack.c.b16 %v3342, %v3341
    %v3369 = vpack.c.b16 %v3344, %v3343
    %v3370 = vpack.c.b16 %v3346, %v3345
    %v3371 = vpack.c.b16 %v3348, %v3347
    %v3372 = vpack.c.b16 %v3350, %v3349
    %v3373 = vpack.c.b16 %v3352, %v3351
    %v3374 = vpack.c.b16 %v3354, %v3353
    %v3375 = vpack.c.b16 %v3356, %v3355
    %v3376 = vpack.c.b16 %v3358, %v3357
    %v3377 = vpack.c.b16 %v3360, %v3359
    %v3378 = vpack.c.b16 %v3362, %v3361
    %3395 = vmatprep.subr.bf16.mxu0 0
    %3396 = vmatpush1.bf16.msra.mxu0 %v3370
    %3397 = vmatprep.subr.bf16.mxu0 0
    %3398 = vmatpush1.bf16.msra.mxu0 %v3369
    %3399 = vmatprep.subr.bf16.mxu0 0
    %3400 = vmatpush1.bf16.msra.mxu0 %v3368
    %3401 = vmatprep.subr.bf16.mxu0 0
    %3402 = vmatpush1.bf16.msra.mxu0 %v3367
    %3403 = vmatprep.subr.bf16.mxu0 0
    %3404 = vmatpush1.bf16.msra.mxu0 %v3366
    %3405 = vmatprep.subr.bf16.mxu0 0
    %3406 = vmatpush1.bf16.msra.mxu0 %v3365
    %3407 = vmatprep.subr.bf16.mxu0 0
    %3408 = vmatpush1.bf16.msra.mxu0 %v3364
    %3409 = vmatprep.subr.bf16.mxu0 0
    %3410 = vmatpush1.bf16.msra.mxu0 %v3363
    %3411 = vmatprep.subr.bf16.mxu0 0
    %3412 = vmatpush2.bf16.msra.mxu0 %v3378
    %3413 = vmatprep.subr.bf16.mxu0 0
    %3414 = vmatpush2.bf16.msra.mxu0 %v3377
    %3415 = vmatprep.subr.bf16.mxu0 0
    %3416 = vmatpush2.bf16.msra.mxu0 %v3376
    %3417 = vmatprep.subr.bf16.mxu0 0
    %3418 = vmatpush2.bf16.msra.mxu0 %v3375
    %3419 = vmatprep.subr.bf16.mxu0 0
    %3420 = vmatpush2.bf16.msra.mxu0 %v3374
    %3421 = vmatprep.subr.bf16.mxu0 0
    %3422 = vmatpush2.bf16.msra.mxu0 %v3373
    %3423 = vmatprep.subr.bf16.mxu0 0
    %3424 = vmatpush2.bf16.msra.mxu0 %v3372
    %3425 = vmatprep.subr.bf16.mxu0 0
    %3426 = vmatpush2.bf16.msra.mxu0 %v3371
    %3427 = vmatprep.mubr.bf16.mxu0 %v3259
    %3428 = vmatmul.mubr.bf16.gmra.mxu0 %v3258
    %v3429 = vpop.f32.mrf.mxu0
    %v3430 = vadd.f32 %v3297, %v3429
    %v3431 = vpop.f32.mrf.mxu0
    %v3432 = vpop.f32.mrf.mxu0
    %v3433 = vpop.f32.mrf.mxu0
    %3434 = vdwg.mxu0
    %3435 = vst [vmem:[%s7] sm:$0xff] %v3430
    // Predicated region
    $region54: #{tanhnet2_forward.1} parent=1 // pred_check
      _
    $region55: #{tanhnet2_forward.1} parent=1 // pred_check_branch
      %3437 = sbr.rel (0) target = $region57
    $region56: #{tanhnet2_forward.1} parent=1 // pred_region
      _
    $region57: #{tanhnet2_forward.1} parent=1 // pred_fallthru
      _
    // Predicated region
    $region58: #{tanhnet2_forward.1} parent=1 // pred_check
      _
    $region59: #{tanhnet2_forward.1} parent=1 // pred_check_branch
      %3439 = sbr.rel (0) target = $region61
    $region60: #{tanhnet2_forward.1} parent=1 // pred_region
      _
    $region61: #{tanhnet2_forward.1} parent=1 // pred_fallthru
      _
    %3440 = vsyncpa [#allocation3], 1
    %3441 = vsyncpa [#allocation5], 1
    %3442 = vsyncpa [#allocation8], 1
    %3443 = vsyncpa [#allocation11], 1

</llo_original>
